<compile_context>
chip_gen: v7x
topology: tpu7x:2x2x1
jax: 0.10.0
libtpu: 0.0.40
codegen_flags: <defaults>
</compile_context>

<pallas_src>
import functools

import jax
import jax.numpy as jnp
from jax.experimental import pallas as pl
from jax.experimental.pallas import tpu as pltpu

LANE = 128


def _round_up(x, m):
    return ((x + m - 1) // m) * m


# ----------------------------- kernels --------------------------------------


def _agg_project_kernel(a_ref, x_ref, w_ref, b_ref, o_ref, acc_ref, *, apply_relu):
    """Aggregate-first GCN layer: acc += A_blk @ X_blk over the reduction axis;
    epilogue projects once per row block: out = relu?(acc @ W^T + b)."""
    k = pl.program_id(1)

    @pl.when(k == 0)
    def _():
        acc_ref[...] = jnp.zeros_like(acc_ref)

    a = a_ref[...].astype(jnp.float32)  # bf16 0/1 adjacency -> exact f32
    acc_ref[...] += jnp.dot(a, x_ref[...], preferred_element_type=jnp.float32)

    @pl.when(k == pl.num_programs(1) - 1)
    def _():
        h = jnp.dot(acc_ref[...], w_ref[...], preferred_element_type=jnp.float32)
        h = h + b_ref[...]
        if apply_relu:
            h = jnp.maximum(h, 0.0)
        o_ref[...] = h.astype(o_ref.dtype)


def _agg_bias_kernel(a_ref, y_ref, b_ref, o_ref, acc_ref, *, apply_relu):
    """Project-first GCN layer (aggregation stage): acc += A_blk @ Y_blk where
    Y = X @ W^T was precomputed; epilogue adds bias (+ optional ReLU) once."""
    k = pl.program_id(1)

    @pl.when(k == 0)
    def _():
        acc_ref[...] = jnp.zeros_like(acc_ref)

    a = a_ref[...].astype(jnp.float32)
    acc_ref[...] += jnp.dot(a, y_ref[...], preferred_element_type=jnp.float32)

    @pl.when(k == pl.num_programs(1) - 1)
    def _():
        h = acc_ref[...] + b_ref[...]
        if apply_relu:
            h = jnp.maximum(h, 0.0)
        o_ref[...] = h.astype(o_ref.dtype)


def _project_kernel(x_ref, w_ref, o_ref):
    """Y_blk = X_blk @ W^T (weights resident across row blocks)."""
    o_ref[...] = jnp.dot(
        x_ref[...], w_ref[...], preferred_element_type=jnp.float32
    ).astype(o_ref.dtype)


# ----------------------------- layer wrapper --------------------------------


def gcn_layer(adj_bf16, x_pad, weight, bias, *, apply_relu, tm, tk):
    """One GCN layer on padded inputs.

    adj_bf16: [Np, Np] bf16 (0/1), x_pad: [Np, Fin_pad] f32 (padded lanes zero),
    weight: [Fout, Fin] (PyTorch layout), bias: [Fout].
    Returns [Np, Fout_pad] f32 with padded lanes zero.
    """
    n_pad = adj_bf16.shape[0]
    out_feats, in_feats = weight.shape
    fin_pad = x_pad.shape[1]
    fout_pad = _round_up(out_feats, LANE)

    # Pre-transposed, zero-padded weight / bias; held resident in VMEM via
    # constant index_maps below.
    w_t = (
        jnp.zeros((fin_pad, fout_pad), jnp.float32)
        .at[:in_feats, :out_feats]
        .set(weight.T)
    )
    b2d = jnp.zeros((1, fout_pad), jnp.float32).at[0, :out_feats].set(bias)

    m_blocks = n_pad // tm
    k_blocks = n_pad // tk

    # Reassociate: project first when it shrinks the N^2 term.
    project_first = out_feats < in_feats

    if project_first:
        # Y = X @ W^T  (cheap matmul, tiled over rows only).
        y = pl.pallas_call(
            _project_kernel,
            out_shape=jax.ShapeDtypeStruct((n_pad, fout_pad), jnp.float32),
            grid=(m_blocks,),
            in_specs=[
                pl.BlockSpec((tm, fin_pad), lambda i: (i, 0)),
                pl.BlockSpec((fin_pad, fout_pad), lambda i: (0, 0)),
            ],
            out_specs=pl.BlockSpec((tm, fout_pad), lambda i: (i, 0)),
            compiler_params=pltpu.CompilerParams(
                dimension_semantics=("parallel",)
            ),
            cost_estimate=pl.CostEstimate(
                flops=2 * n_pad * fin_pad * fout_pad,
                transcendentals=0,
                bytes_accessed=4 * n_pad * (fin_pad + fout_pad)
                + 4 * fin_pad * fout_pad,
            ),
        )(x_pad, w_t)

        # out = A @ Y + b
        kernel = functools.partial(_agg_bias_kernel, apply_relu=apply_relu)
        return pl.pallas_call(
            kernel,
            out_shape=jax.ShapeDtypeStruct((n_pad, fout_pad), jnp.float32),
            grid=(m_blocks, k_blocks),
            in_specs=[
                pl.BlockSpec((tm, tk), lambda i, k: (i, k)),          # A (bf16)
                pl.BlockSpec((tk, fout_pad), lambda i, k: (k, 0)),    # Y
                pl.BlockSpec((1, fout_pad), lambda i, k: (0, 0)),     # bias
            ],
            out_specs=pl.BlockSpec((tm, fout_pad), lambda i, k: (i, 0)),
            scratch_shapes=[pltpu.VMEM((tm, fout_pad), jnp.float32)],
            compiler_params=pltpu.CompilerParams(
                dimension_semantics=("parallel", "arbitrary")
            ),
            cost_estimate=pl.CostEstimate(
                flops=2 * n_pad * n_pad * fout_pad,
                transcendentals=0,
                bytes_accessed=2 * n_pad * n_pad + 8 * n_pad * fout_pad,
            ),
        )(adj_bf16, y, b2d)

    # Aggregate-first, fully fused: out = relu?((A @ X) @ W^T + b)
    kernel = functools.partial(_agg_project_kernel, apply_relu=apply_relu)
    return pl.pallas_call(
        kernel,
        out_shape=jax.ShapeDtypeStruct((n_pad, fout_pad), jnp.float32),
        grid=(m_blocks, k_blocks),
        in_specs=[
            pl.BlockSpec((tm, tk), lambda i, k: (i, k)),              # A (bf16)
            pl.BlockSpec((tk, fin_pad), lambda i, k: (k, 0)),         # X
            pl.BlockSpec((fin_pad, fout_pad), lambda i, k: (0, 0)),   # W^T
            pl.BlockSpec((1, fout_pad), lambda i, k: (0, 0)),         # bias
        ],
        out_specs=pl.BlockSpec((tm, fout_pad), lambda i, k: (i, 0)),
        scratch_shapes=[pltpu.VMEM((tm, fin_pad), jnp.float32)],
        compiler_params=pltpu.CompilerParams(
            dimension_semantics=("parallel", "arbitrary")
        ),
        cost_estimate=pl.CostEstimate(
            flops=2 * n_pad * n_pad * fin_pad + 2 * n_pad * fin_pad * fout_pad,
            transcendentals=0,
            bytes_accessed=2 * n_pad * n_pad
            + 4 * n_pad * (fin_pad + fout_pad)
            + 4 * fin_pad * fout_pad,
        ),
    )(adj_bf16, x_pad, w_t, b2d)


# ----------------------------- model forward --------------------------------


def label_net(adj, features, params):
    """LabelNet forward: GCN1 -> ReLU -> GCN2 (dense adjacency form)."""
    n = adj.shape[0]
    fin = features.shape[1]
    num_classes = params["w2"].shape[0]

    # Lane-multiple tiles; pad N so the grid divides exactly.  Tile sizes are
    # small enough to double-buffer comfortably within the default scoped VMEM
    # limit on all generations (incl. v7x's 64 MiB physical VMEM).
    tile = min(512, _round_up(n, LANE))
    n_pad = _round_up(n, tile)
    fin_pad = _round_up(fin, LANE)

    # Adjacency streamed as bf16 (0/1 -> lossless); features padded to 128 lanes.
    adj_p = (
        jnp.zeros((n_pad, n_pad), jnp.bfloat16)
        .at[:n, :n]
        .set(adj.astype(jnp.bfloat16))
    )
    x_p = jnp.zeros((n_pad, fin_pad), jnp.float32).at[:n, :fin].set(features)

    h = gcn_layer(
        adj_p, x_p, params["w1"], params["b1"], apply_relu=True, tm=tile, tk=tile
    )
    out = gcn_layer(
        adj_p, h, params["w2"], params["b2"], apply_relu=False, tm=tile, tk=tile
    )
    return out[:n, :num_classes]


def init_params(key, in_node_features, hidden_gcn_size, num_classes):
    """Deterministic parameter init (nn.Linear-style uniform bounds)."""
    k1, k2, k3, k4 = jax.random.split(key, 4)
    bound1 = 1.0 / jnp.sqrt(in_node_features)
    bound2 = 1.0 / jnp.sqrt(hidden_gcn_size)
    return {
        "w1": jax.random.uniform(
            k1, (hidden_gcn_size, in_node_features), jnp.float32, -bound1, bound1
        ),
        "b1": jax.random.uniform(
            k2, (hidden_gcn_size,), jnp.float32, -bound1, bound1
        ),
        "w2": jax.random.uniform(
            k3, (num_classes, hidden_gcn_size), jnp.float32, -bound2, bound2
        ),
        "b2": jax.random.uniform(k4, (num_classes,), jnp.float32, -bound2, bound2),
    }


def _reference(adj, features, params):
    """Pure-JAX reference (full f32 precision) for correctness checking."""
    prec = jax.lax.Precision.HIGHEST
    h = (
        jnp.dot(jnp.dot(adj, features, precision=prec), params["w1"].T, precision=prec)
        + params["b1"]
    )
    h = jnp.maximum(h, 0.0)
    return (
        jnp.dot(jnp.dot(adj, h, precision=prec), params["w2"].T, precision=prec)
        + params["b2"]
    )


if __name__ == "__main__":
    # Small synthetic problem: N=16 nodes, 8 in-features, 32 hidden, 4 classes.
    N, IN_FEATS, HIDDEN, NUM_CLASSES = 16, 8, 32, 4

    key = jax.random.PRNGKey(0)
    k_adj, k_feat, k_params = jax.random.split(key, 3)

    # Deterministic random graph: dense 0/1 adjacency (row = dst, col = src).
    adj = (jax.random.uniform(k_adj, (N, N)) < 0.3).astype(jnp.float32)
    features = jax.random.normal(k_feat, (N, IN_FEATS), dtype=jnp.float32)
    params = init_params(k_params, IN_FEATS, HIDDEN, NUM_CLASSES)

    fwd = jax.jit(label_net)
    out = jax.block_until_ready(fwd(adj, features, params))

    ref = _reference(adj, features, params)
    assert out.shape == (N, NUM_CLASSES)
    assert jnp.allclose(out, ref, atol=1e-3, rtol=1e-3), "mismatch vs reference"

    print("KERNEL_OK")
</pallas_src>

<mosaic_0001>
module attributes {stable_mosaic.version = 11 : i64} {
  func.func @_agg_project_kernel(%arg0: i32, %arg1: i32, %arg2: memref<128x128xbf16, #tpu.memory_space<vmem>>, %arg3: memref<128x128xf32, #tpu.memory_space<vmem>>, %arg4: memref<128x128xf32, #tpu.memory_space<vmem>>, %arg5: memref<1x128xf32, #tpu.memory_space<vmem>>, %arg6: memref<128x128xf32, #tpu.memory_space<vmem>>, %arg7: memref<128x128xf32, #tpu.memory_space<vmem>>) attributes {dimension_semantics = [#tpu.dimension_semantics<parallel>, #tpu.dimension_semantics<arbitrary>], iteration_bounds = array<i64: 1, 1>, scalar_prefetch = 0 : i64, scratch_operands = 1 : i64, tpu.core_type = #tpu.core_type<tc>, window_params = [{transform_indices = @transform_0, window_bounds = array<i64: 128, 128>}, {transform_indices = @transform_1, window_bounds = array<i64: 128, 128>}, {pipeline_mode = #tpu.pipeline_mode<synchronous>, transform_indices = @transform_2, window_bounds = array<i64: 128, 128>}, {pipeline_mode = #tpu.pipeline_mode<synchronous>, transform_indices = @transform_3, window_bounds = array<i64: 1, 128>}, {transform_indices = @transform_4, window_bounds = array<i64: 128, 128>}]} {
    %c0_i32 = arith.constant 0 : i32
    %0 = arith.cmpi eq, %arg1, %c0_i32 : i32
    %1 = arith.extui %0 : i1 to i32
    %c0_i32_0 = arith.constant 0 : i32
    %2 = arith.cmpi ne, %1, %c0_i32_0 : i32
    scf.if %2 {
      %cst_10 = arith.constant 0.000000e+00 : f32
      %13 = vector.broadcast %cst_10 : f32 to vector<128x128xf32>
      %c0_11 = arith.constant 0 : index
      %c0_12 = arith.constant 0 : index
      %14 = vector.load %arg7[%c0_11, %c0_12] : memref<128x128xf32, #tpu.memory_space<vmem>>, vector<128x128xf32>
      tpu.vector_store %arg7[%c0_11, %c0_12], %13 {strides = array<i32>} : memref<128x128xf32, #tpu.memory_space<vmem>>, vector<128x128xf32>,
    } else {
    }
    %c0 = arith.constant 0 : index
    %c0_1 = arith.constant 0 : index
    %3 = vector.load %arg2[%c0, %c0_1] : memref<128x128xbf16, #tpu.memory_space<vmem>>, vector<128x128xbf16>
    %4 = arith.extf %3 : vector<128x128xbf16> to vector<128x128xf32>
    %c0_2 = arith.constant 0 : index
    %c0_3 = arith.constant 0 : index
    %5 = vector.load %arg7[%c0_2, %c0_3] : memref<128x128xf32, #tpu.memory_space<vmem>>, vector<128x128xf32>
    %c0_4 = arith.constant 0 : index
    %c0_5 = arith.constant 0 : index
    %6 = vector.load %arg3[%c0_4, %c0_5] : memref<128x128xf32, #tpu.memory_space<vmem>>, vector<128x128xf32>
    %cst = arith.constant dense<0.000000e+00> : vector<128x128xf32>
    %7 = tpu.matmul %4, %6, %cst {dimension_numbers = #tpu.dot_dimension_numbers<[1], [0], [0], [1], [0, 0, 1, 1], [], []>} : vector<128x128xf32>, vector<128x128xf32>, vector<128x128xf32> -> vector<128x128xf32>
    %8 = arith.addf %5, %7 : vector<128x128xf32>
    %c0_6 = arith.constant 0 : index
    %c0_7 = arith.constant 0 : index
    %9 = vector.load %arg7[%c0_6, %c0_7] : memref<128x128xf32, #tpu.memory_space<vmem>>, vector<128x128xf32>
    tpu.vector_store %arg7[%c0_6, %c0_7], %8 {strides = array<i32>} : memref<128x128xf32, #tpu.memory_space<vmem>>, vector<128x128xf32>,
    %c0_i32_8 = arith.constant 0 : i32
    %10 = arith.cmpi eq, %arg1, %c0_i32_8 : i32
    %11 = arith.extui %10 : i1 to i32
    %c0_i32_9 = arith.constant 0 : i32
    %12 = arith.cmpi ne, %11, %c0_i32_9 : i32
    scf.if %12 {
      %c0_10 = arith.constant 0 : index
      %c0_11 = arith.constant 0 : index
      %13 = vector.load %arg7[%c0_10, %c0_11] : memref<128x128xf32, #tpu.memory_space<vmem>>, vector<128x128xf32>
      %c0_12 = arith.constant 0 : index
      %c0_13 = arith.constant 0 : index
      %14 = vector.load %arg4[%c0_12, %c0_13] : memref<128x128xf32, #tpu.memory_space<vmem>>, vector<128x128xf32>
      %cst_14 = arith.constant dense<0.000000e+00> : vector<128x128xf32>
      %15 = tpu.matmul %13, %14, %cst_14 {dimension_numbers = #tpu.dot_dimension_numbers<[1], [0], [0], [1], [0, 0, 1, 1], [], []>} : vector<128x128xf32>, vector<128x128xf32>, vector<128x128xf32> -> vector<128x128xf32>
      %c0_15 = arith.constant 0 : index
      %c0_16 = arith.constant 0 : index
      %16 = vector.load %arg5[%c0_15, %c0_16] : memref<1x128xf32, #tpu.memory_space<vmem>>, vector<1x128xf32>
      %17 = vector.broadcast %16 : vector<1x128xf32> to vector<128x128xf32>
      %18 = arith.addf %15, %17 : vector<128x128xf32>
      %cst_17 = arith.constant 0.000000e+00 : f32
      %19 = vector.broadcast %cst_17 : f32 to vector<128x128xf32>
      %20 = arith.maximumf %18, %19 : vector<128x128xf32>
      %c0_18 = arith.constant 0 : index
      %c0_19 = arith.constant 0 : index
      %21 = vector.load %arg6[%c0_18, %c0_19] : memref<128x128xf32, #tpu.memory_space<vmem>>, vector<128x128xf32>
      tpu.vector_store %arg6[%c0_18, %c0_19], %20 {strides = array<i32>} : memref<128x128xf32, #tpu.memory_space<vmem>>, vector<128x128xf32>,
    } else {
    }
    return
  }
  func.func @transform_0(%arg0: i32, %arg1: i32) -> (i32, i32) {
    %c0_i32 = arith.constant 0 : i32
    return %arg0, %arg1 : i32, i32
  }
  func.func @transform_1(%arg0: i32, %arg1: i32) -> (i32, i32) {
    %c0_i32 = arith.constant 0 : i32
    %c0_i32_0 = arith.constant 0 : i32
    return %arg1, %c0_i32 : i32, i32
  }
  func.func @transform_2(%arg0: i32, %arg1: i32) -> (i32, i32) {
    %c0_i32 = arith.constant 0 : i32
    %c0_i32_0 = arith.constant 0 : i32
    %c0_i32_1 = arith.constant 0 : i32
    return %c0_i32, %c0_i32_0 : i32, i32
  }
  func.func @transform_3(%arg0: i32, %arg1: i32) -> (i32, i32) {
    %c0_i32 = arith.constant 0 : i32
    %c0_i32_0 = arith.constant 0 : i32
    %c0_i32_1 = arith.constant 0 : i32
    return %c0_i32, %c0_i32_0 : i32, i32
  }
  func.func @transform_4(%arg0: i32, %arg1: i32) -> (i32, i32) {
    %c0_i32 = arith.constant 0 : i32
    %c0_i32_0 = arith.constant 0 : i32
    return %arg0, %c0_i32 : i32, i32
  }
}

module attributes {stable_mosaic.version = 11 : i64} {
  func.func @_project_kernel(%arg0: i32, %arg1: memref<128x128xf32, #tpu.memory_space<vmem>>, %arg2: memref<128x128xf32, #tpu.memory_space<vmem>>, %arg3: memref<128x128xf32, #tpu.memory_space<vmem>>) attributes {dimension_semantics = [#tpu.dimension_semantics<parallel>], iteration_bounds = array<i64: 1>, scalar_prefetch = 0 : i64, scratch_operands = 0 : i64, tpu.core_type = #tpu.core_type<tc>, window_params = [{transform_indices = @transform_0, window_bounds = array<i64: 128, 128>}, {pipeline_mode = #tpu.pipeline_mode<synchronous>, transform_indices = @transform_1, window_bounds = array<i64: 128, 128>}, {transform_indices = @transform_2, window_bounds = array<i64: 128, 128>}]} {
    %c0 = arith.constant 0 : index
    %c0_0 = arith.constant 0 : index
    %0 = vector.load %arg1[%c0, %c0_0] : memref<128x128xf32, #tpu.memory_space<vmem>>, vector<128x128xf32>
    %c0_1 = arith.constant 0 : index
    %c0_2 = arith.constant 0 : index
    %1 = vector.load %arg2[%c0_1, %c0_2] : memref<128x128xf32, #tpu.memory_space<vmem>>, vector<128x128xf32>
    %cst = arith.constant dense<0.000000e+00> : vector<128x128xf32>
    %2 = tpu.matmul %0, %1, %cst {dimension_numbers = #tpu.dot_dimension_numbers<[1], [0], [0], [1], [0, 0, 1, 1], [], []>} : vector<128x128xf32>, vector<128x128xf32>, vector<128x128xf32> -> vector<128x128xf32>
    %c0_3 = arith.constant 0 : index
    %c0_4 = arith.constant 0 : index
    %3 = vector.load %arg3[%c0_3, %c0_4] : memref<128x128xf32, #tpu.memory_space<vmem>>, vector<128x128xf32>
    tpu.vector_store %arg3[%c0_3, %c0_4], %2 {strides = array<i32>} : memref<128x128xf32, #tpu.memory_space<vmem>>, vector<128x128xf32>,
    return
  }
  func.func @transform_0(%arg0: i32) -> (i32, i32) {
    %c0_i32 = arith.constant 0 : i32
    %c0_i32_0 = arith.constant 0 : i32
    return %arg0, %c0_i32 : i32, i32
  }
  func.func @transform_1(%arg0: i32) -> (i32, i32) {
    %c0_i32 = arith.constant 0 : i32
    %c0_i32_0 = arith.constant 0 : i32
    %c0_i32_1 = arith.constant 0 : i32
    return %c0_i32, %c0_i32_0 : i32, i32
  }
  func.func @transform_2(%arg0: i32) -> (i32, i32) {
    %c0_i32 = arith.constant 0 : i32
    %c0_i32_0 = arith.constant 0 : i32
    return %arg0, %c0_i32 : i32, i32
  }
}

module attributes {stable_mosaic.version = 11 : i64} {
  func.func @_agg_bias_kernel(%arg0: i32, %arg1: i32, %arg2: memref<128x128xbf16, #tpu.memory_space<vmem>>, %arg3: memref<128x128xf32, #tpu.memory_space<vmem>>, %arg4: memref<1x128xf32, #tpu.memory_space<vmem>>, %arg5: memref<128x128xf32, #tpu.memory_space<vmem>>, %arg6: memref<128x128xf32, #tpu.memory_space<vmem>>) attributes {dimension_semantics = [#tpu.dimension_semantics<parallel>, #tpu.dimension_semantics<arbitrary>], iteration_bounds = array<i64: 1, 1>, scalar_prefetch = 0 : i64, scratch_operands = 1 : i64, tpu.core_type = #tpu.core_type<tc>, window_params = [{transform_indices = @transform_0, window_bounds = array<i64: 128, 128>}, {transform_indices = @transform_1, window_bounds = array<i64: 128, 128>}, {pipeline_mode = #tpu.pipeline_mode<synchronous>, transform_indices = @transform_2, window_bounds = array<i64: 1, 128>}, {transform_indices = @transform_3, window_bounds = array<i64: 128, 128>}]} {
    %c0_i32 = arith.constant 0 : i32
    %0 = arith.cmpi eq, %arg1, %c0_i32 : i32
    %1 = arith.extui %0 : i1 to i32
    %c0_i32_0 = arith.constant 0 : i32
    %2 = arith.cmpi ne, %1, %c0_i32_0 : i32
    scf.if %2 {
      %cst_10 = arith.constant 0.000000e+00 : f32
      %13 = vector.broadcast %cst_10 : f32 to vector<128x128xf32>
      %c0_11 = arith.constant 0 : index
      %c0_12 = arith.constant 0 : index
      %14 = vector.load %arg6[%c0_11, %c0_12] : memref<128x128xf32, #tpu.memory_space<vmem>>, vector<128x128xf32>
      tpu.vector_store %arg6[%c0_11, %c0_12], %13 {strides = array<i32>} : memref<128x128xf32, #tpu.memory_space<vmem>>, vector<128x128xf32>,
    } else {
    }
    %c0 = arith.constant 0 : index
    %c0_1 = arith.constant 0 : index
    %3 = vector.load %arg2[%c0, %c0_1] : memref<128x128xbf16, #tpu.memory_space<vmem>>, vector<128x128xbf16>
    %4 = arith.extf %3 : vector<128x128xbf16> to vector<128x128xf32>
    %c0_2 = arith.constant 0 : index
    %c0_3 = arith.constant 0 : index
    %5 = vector.load %arg6[%c0_2, %c0_3] : memref<128x128xf32, #tpu.memory_space<vmem>>, vector<128x128xf32>
    %c0_4 = arith.constant 0 : index
    %c0_5 = arith.constant 0 : index
    %6 = vector.load %arg3[%c0_4, %c0_5] : memref<128x128xf32, #tpu.memory_space<vmem>>, vector<128x128xf32>
    %cst = arith.constant dense<0.000000e+00> : vector<128x128xf32>
    %7 = tpu.matmul %4, %6, %cst {dimension_numbers = #tpu.dot_dimension_numbers<[1], [0], [0], [1], [0, 0, 1, 1], [], []>} : vector<128x128xf32>, vector<128x128xf32>, vector<128x128xf32> -> vector<128x128xf32>
    %8 = arith.addf %5, %7 : vector<128x128xf32>
    %c0_6 = arith.constant 0 : index
    %c0_7 = arith.constant 0 : index
    %9 = vector.load %arg6[%c0_6, %c0_7] : memref<128x128xf32, #tpu.memory_space<vmem>>, vector<128x128xf32>
    tpu.vector_store %arg6[%c0_6, %c0_7], %8 {strides = array<i32>} : memref<128x128xf32, #tpu.memory_space<vmem>>, vector<128x128xf32>,
    %c0_i32_8 = arith.constant 0 : i32
    %10 = arith.cmpi eq, %arg1, %c0_i32_8 : i32
    %11 = arith.extui %10 : i1 to i32
    %c0_i32_9 = arith.constant 0 : i32
    %12 = arith.cmpi ne, %11, %c0_i32_9 : i32
    scf.if %12 {
      %c0_10 = arith.constant 0 : index
      %c0_11 = arith.constant 0 : index
      %13 = vector.load %arg6[%c0_10, %c0_11] : memref<128x128xf32, #tpu.memory_space<vmem>>, vector<128x128xf32>
      %c0_12 = arith.constant 0 : index
      %c0_13 = arith.constant 0 : index
      %14 = vector.load %arg4[%c0_12, %c0_13] : memref<1x128xf32, #tpu.memory_space<vmem>>, vector<1x128xf32>
      %15 = vector.broadcast %14 : vector<1x128xf32> to vector<128x128xf32>
      %16 = arith.addf %13, %15 : vector<128x128xf32>
      %c0_14 = arith.constant 0 : index
      %c0_15 = arith.constant 0 : index
      %17 = vector.load %arg5[%c0_14, %c0_15] : memref<128x128xf32, #tpu.memory_space<vmem>>, vector<128x128xf32>
      tpu.vector_store %arg5[%c0_14, %c0_15], %16 {strides = array<i32>} : memref<128x128xf32, #tpu.memory_space<vmem>>, vector<128x128xf32>,
    } else {
    }
    return
  }
  func.func @transform_0(%arg0: i32, %arg1: i32) -> (i32, i32) {
    %c0_i32 = arith.constant 0 : i32
    return %arg0, %arg1 : i32, i32
  }
  func.func @transform_1(%arg0: i32, %arg1: i32) -> (i32, i32) {
    %c0_i32 = arith.constant 0 : i32
    %c0_i32_0 = arith.constant 0 : i32
    return %arg1, %c0_i32 : i32, i32
  }
  func.func @transform_2(%arg0: i32, %arg1: i32) -> (i32, i32) {
    %c0_i32 = arith.constant 0 : i32
    %c0_i32_0 = arith.constant 0 : i32
    %c0_i32_1 = arith.constant 0 : i32
    return %c0_i32, %c0_i32_0 : i32, i32
  }
  func.func @transform_3(%arg0: i32, %arg1: i32) -> (i32, i32) {
    %c0_i32 = arith.constant 0 : i32
    %c0_i32_0 = arith.constant 0 : i32
    return %arg0, %c0_i32 : i32, i32
  }
}

</mosaic_0001>

<llo_original>
// kernel: label_net.4
$region0: #{label_net.4}
  #allocation0 [shape = 'u32[]', space=smem, size = 0x4, offset = 0x4, fixed_abs, tag = 'smem constant byte address 0x4 - core index']
  #allocation1 [shape = 'u32[144,128]{1,0:T(1,128)}', space=vmem, size = 0x12000, scoped, tag = 'internal scratch']
  %s0 = inlined_call_operand.vmem [shape: f32[128,128], index: 0, kind: input, shape index: {}]
  %s1 = inlined_call_operand.vmem [shape: f32[128,128], index: 1, kind: input, shape index: {}]
  %s2 = inlined_call_operand.vmem [shape: f32[128,128], index: 2, kind: output, shape index: {}]
  %s3 = sld [smem:[#allocation0]]
  $region18: #{label_net.4} parent=0
    _
  %s5 = ssub.s32 1, %s3
  %s6 = scalar_select 0, %s5, %s3
  // Predicated region
  $region2: #{label_net.4} parent=0 // pred_check
    _
  $region3: #{label_net.4} parent=0 // pred_check_branch
    %8 = sbr.rel (0) target = $region5
  $region4: #{label_net.4} parent=0 // pred_region
    _
  $region5: #{label_net.4} parent=0 // pred_fallthru
    _
  // Predicated region
  $region6: #{label_net.4} parent=0 // pred_check
    _
  $region7: #{label_net.4} parent=0 // pred_check_branch
    %10 = sbr.rel (0) target = $region9
  $region8: #{label_net.4} parent=0 // pred_region
    _
  $region9: #{label_net.4} parent=0 // pred_fallthru
    _
  %v11 = vld [vmem:[%s0] sm:$0xff]
  %v12 = vld [vmem:[%s0 + $0x8] sm:$0xff]
  %v13 = vld [vmem:[%s0 + $0x10] sm:$0xff]
  %v14 = vld [vmem:[%s0 + $0x18] sm:$0xff]
  %v15 = vld [vmem:[%s0 + $0x20] sm:$0xff]
  %v16 = vld [vmem:[%s0 + $0x28] sm:$0xff]
  %v17 = vld [vmem:[%s0 + $0x30] sm:$0xff]
  %v18 = vld [vmem:[%s0 + $0x38] sm:$0xff]
  %v19 = vld [vmem:[%s0 + $0x40] sm:$0xff]
  %v20 = vld [vmem:[%s0 + $0x48] sm:$0xff]
  %v21 = vld [vmem:[%s0 + $0x50] sm:$0xff]
  %v22 = vld [vmem:[%s0 + $0x58] sm:$0xff]
  %v23 = vld [vmem:[%s0 + $0x60] sm:$0xff]
  %v24 = vld [vmem:[%s0 + $0x68] sm:$0xff]
  %v25 = vld [vmem:[%s0 + $0x70] sm:$0xff]
  %v26 = vld [vmem:[%s0 + $0x78] sm:$0xff]
  %v27 = vld [vmem:[%s1] sm:$0xff]
  %v28 = vld [vmem:[%s1 + $0x8] sm:$0xff]
  %v29 = vld [vmem:[%s1 + $0x10] sm:$0xff]
  %v30 = vld [vmem:[%s1 + $0x18] sm:$0xff]
  %v31 = vld [vmem:[%s1 + $0x20] sm:$0xff]
  %v32 = vld [vmem:[%s1 + $0x28] sm:$0xff]
  %v33 = vld [vmem:[%s1 + $0x30] sm:$0xff]
  %v34 = vld [vmem:[%s1 + $0x38] sm:$0xff]
  %v35 = vld [vmem:[%s1 + $0x40] sm:$0xff]
  %v36 = vld [vmem:[%s1 + $0x48] sm:$0xff]
  %v37 = vld [vmem:[%s1 + $0x50] sm:$0xff]
  %v38 = vld [vmem:[%s1 + $0x58] sm:$0xff]
  %v39 = vld [vmem:[%s1 + $0x60] sm:$0xff]
  %v40 = vld [vmem:[%s1 + $0x68] sm:$0xff]
  %v41 = vld [vmem:[%s1 + $0x70] sm:$0xff]
  %v42 = vld [vmem:[%s1 + $0x78] sm:$0xff]
  %43 = vmatprep.subr.mxu0 0.0
  %44 = vmatpush1.msra.mxu0 %v27
  %45 = vmatprep.subr.mxu0 0.0
  %46 = vmatpush1.msra.mxu0 %v28
  %47 = vmatprep.subr.mxu0 0.0
  %48 = vmatpush1.msra.mxu0 %v29
  %49 = vmatprep.subr.mxu0 0.0
  %50 = vmatpush1.msra.mxu0 %v30
  %51 = vmatprep.subr.mxu0 0.0
  %52 = vmatpush1.msra.mxu0 %v31
  %53 = vmatprep.subr.mxu0 0.0
  %54 = vmatpush1.msra.mxu0 %v32
  %55 = vmatprep.subr.mxu0 0.0
  %56 = vmatpush1.msra.mxu0 %v33
  %57 = vmatprep.subr.mxu0 0.0
  %58 = vmatpush1.msra.mxu0 %v34
  %59 = vmatprep.subr.mxu0 0.0
  %60 = vmatpush1.msra.mxu0 %v35
  %61 = vmatprep.subr.mxu0 0.0
  %62 = vmatpush1.msra.mxu0 %v36
  %63 = vmatprep.subr.mxu0 0.0
  %64 = vmatpush1.msra.mxu0 %v37
  %65 = vmatprep.subr.mxu0 0.0
  %66 = vmatpush1.msra.mxu0 %v38
  %67 = vmatprep.subr.mxu0 0.0
  %68 = vmatpush1.msra.mxu0 %v39
  %69 = vmatprep.subr.mxu0 0.0
  %70 = vmatpush1.msra.mxu0 %v40
  %71 = vmatprep.subr.mxu0 0.0
  %72 = vmatpush1.msra.mxu0 %v41
  %73 = vmatprep.subr.mxu0 0.0
  %74 = vmatpush1.msra.mxu0 %v42
  %75 = vmatprep.subr.mxu0 0.0
  %76 = vmatpush1.msra.mxu0 0.0
  %77 = vmatprep.subr.mxu0 0.0
  %78 = vmatpush1.msra.mxu0 0.0
  %79 = vmatprep.subr.mxu0 0.0
  %80 = vmatpush1.msra.mxu0 0.0
  %81 = vmatprep.subr.mxu0 0.0
  %82 = vmatpush1.msra.mxu0 0.0
  %83 = vmatprep.subr.mxu0 0.0
  %84 = vmatpush1.msra.mxu0 0.0
  %85 = vmatprep.subr.mxu0 0.0
  %86 = vmatpush1.msra.mxu0 0.0
  %87 = vmatprep.subr.mxu0 0.0
  %88 = vmatpush1.msra.mxu0 0.0
  %89 = vmatprep.subr.mxu0 0.0
  %90 = vmatpush1.msra.mxu0 0.0
  %91 = vmatprep.subr.mxu0 0.0
  %92 = vmatpush1.msra.mxu0 0.0
  %93 = vmatprep.subr.mxu0 0.0
  %94 = vmatpush1.msra.mxu0 0.0
  %95 = vmatprep.subr.mxu0 0.0
  %96 = vmatpush1.msra.mxu0 0.0
  %97 = vmatprep.subr.mxu0 0.0
  %98 = vmatpush1.msra.mxu0 0.0
  %99 = vmatprep.subr.mxu0 0.0
  %100 = vmatpush1.msra.mxu0 0.0
  %101 = vmatprep.subr.mxu0 0.0
  %102 = vmatpush1.msra.mxu0 0.0
  %103 = vmatprep.subr.mxu0 0.0
  %104 = vmatpush1.msra.mxu0 0.0
  %105 = vmatprep.subr.mxu0 0.0
  %106 = vmatpush1.msra.mxu0 0.0
  %107 = vmatprep.mubr.f32.mxu0 0.0
  %108 = vmatmul.mubr.f32.gmra.mrb[0].mxu0 %v11
  %v109 = vpop.f32.mrb[0].mxu0
  %v110 = vadd.f32 0.0, %v109
  %v111 = vpop.f32.mrb[0].mxu0
  %112 = vmatprep.mubr.f32.mxu0 0.0
  %113 = vmatmul.mubr.f32.gmra.mrb[0].mxu0 %v12
  %v114 = vpop.f32.mrb[0].mxu0
  %v115 = vadd.f32 0.0, %v114
  %v116 = vpop.f32.mrb[0].mxu0
  %117 = vmatprep.mubr.f32.mxu0 0.0
  %118 = vmatmul.mubr.f32.gmra.mrb[0].mxu0 %v13
  %v119 = vpop.f32.mrb[0].mxu0
  %v120 = vadd.f32 0.0, %v119
  %v121 = vpop.f32.mrb[0].mxu0
  %122 = vmatprep.mubr.f32.mxu0 0.0
  %123 = vmatmul.mubr.f32.gmra.mrb[0].mxu0 %v14
  %v124 = vpop.f32.mrb[0].mxu0
  %v125 = vadd.f32 0.0, %v124
  %v126 = vpop.f32.mrb[0].mxu0
  %127 = vmatprep.mubr.f32.mxu0 0.0
  %128 = vmatmul.mubr.f32.gmra.mrb[0].mxu0 %v15
  %v129 = vpop.f32.mrb[0].mxu0
  %v130 = vadd.f32 0.0, %v129
  %v131 = vpop.f32.mrb[0].mxu0
  %132 = vmatprep.mubr.f32.mxu0 0.0
  %133 = vmatmul.mubr.f32.gmra.mrb[0].mxu0 %v16
  %v134 = vpop.f32.mrb[0].mxu0
  %v135 = vadd.f32 0.0, %v134
  %v136 = vpop.f32.mrb[0].mxu0
  %137 = vmatprep.mubr.f32.mxu0 0.0
  %138 = vmatmul.mubr.f32.gmra.mrb[0].mxu0 %v17
  %v139 = vpop.f32.mrb[0].mxu0
  %v140 = vadd.f32 0.0, %v139
  %v141 = vpop.f32.mrb[0].mxu0
  %142 = vmatprep.mubr.f32.mxu0 0.0
  %143 = vmatmul.mubr.f32.gmra.mrb[0].mxu0 %v18
  %v144 = vpop.f32.mrb[0].mxu0
  %v145 = vadd.f32 0.0, %v144
  %v146 = vpop.f32.mrb[0].mxu0
  %147 = vmatprep.mubr.f32.mxu0 0.0
  %148 = vmatmul.mubr.f32.gmra.mrb[0].mxu0 %v19
  %v149 = vpop.f32.mrb[0].mxu0
  %v150 = vadd.f32 0.0, %v149
  %v151 = vpop.f32.mrb[0].mxu0
  %152 = vmatprep.mubr.f32.mxu0 0.0
  %153 = vmatmul.mubr.f32.gmra.mrb[0].mxu0 %v20
  %v154 = vpop.f32.mrb[0].mxu0
  %v155 = vadd.f32 0.0, %v154
  %v156 = vpop.f32.mrb[0].mxu0
  %157 = vmatprep.mubr.f32.mxu0 0.0
  %158 = vmatmul.mubr.f32.gmra.mrb[0].mxu0 %v21
  %v159 = vpop.f32.mrb[0].mxu0
  %v160 = vadd.f32 0.0, %v159
  %v161 = vpop.f32.mrb[0].mxu0
  %162 = vmatprep.mubr.f32.mxu0 0.0
  %163 = vmatmul.mubr.f32.gmra.mrb[0].mxu0 %v22
  %v164 = vpop.f32.mrb[0].mxu0
  %v165 = vadd.f32 0.0, %v164
  %v166 = vpop.f32.mrb[0].mxu0
  %167 = vmatprep.mubr.f32.mxu0 0.0
  %168 = vmatmul.mubr.f32.gmra.mrb[0].mxu0 %v23
  %v169 = vpop.f32.mrb[0].mxu0
  %v170 = vadd.f32 0.0, %v169
  %v171 = vpop.f32.mrb[0].mxu0
  %172 = vmatprep.mubr.f32.mxu0 0.0
  %173 = vmatmul.mubr.f32.gmra.mrb[0].mxu0 %v24
  %v174 = vpop.f32.mrb[0].mxu0
  %v175 = vadd.f32 0.0, %v174
  %v176 = vpop.f32.mrb[0].mxu0
  %177 = vmatprep.mubr.f32.mxu0 0.0
  %178 = vmatmul.mubr.f32.gmra.mrb[0].mxu0 %v25
  %v179 = vpop.f32.mrb[0].mxu0
  %v180 = vadd.f32 0.0, %v179
  %v181 = vpop.f32.mrb[0].mxu0
  %182 = vmatprep.mubr.f32.mxu0 0.0
  %183 = vmatmul.mubr.f32.gmra.mrb[0].mxu0 %v26
  %v184 = vpop.f32.mrb[0].mxu0
  %v185 = vadd.f32 0.0, %v184
  %v186 = vpop.f32.mrb[0].mxu0
  %187 = vdwg.mxu0
  %188 = vst [vmem:[%s2] sm:$0xff] %v110
  %189 = vst [vmem:[%s2 + $0x8] sm:$0xff] %v115
  %190 = vst [vmem:[%s2 + $0x10] sm:$0xff] %v120
  %191 = vst [vmem:[%s2 + $0x18] sm:$0xff] %v125
  %192 = vst [vmem:[%s2 + $0x20] sm:$0xff] %v130
  %193 = vst [vmem:[%s2 + $0x28] sm:$0xff] %v135
  %194 = vst [vmem:[%s2 + $0x30] sm:$0xff] %v140
  %195 = vst [vmem:[%s2 + $0x38] sm:$0xff] %v145
  %196 = vst [vmem:[%s2 + $0x40] sm:$0xff] %v150
  %197 = vst [vmem:[%s2 + $0x48] sm:$0xff] %v155
  %198 = vst [vmem:[%s2 + $0x50] sm:$0xff] %v160
  %199 = vst [vmem:[%s2 + $0x58] sm:$0xff] %v165
  %200 = vst [vmem:[%s2 + $0x60] sm:$0xff] %v170
  %201 = vst [vmem:[%s2 + $0x68] sm:$0xff] %v175
  %202 = vst [vmem:[%s2 + $0x70] sm:$0xff] %v180
  %203 = vst [vmem:[%s2 + $0x78] sm:$0xff] %v185
  // Predicated region
  $region10: #{label_net.4} parent=0 // pred_check
    _
  $region11: #{label_net.4} parent=0 // pred_check_branch
    %205 = sbr.rel (0) target = $region13
  $region12: #{label_net.4} parent=0 // pred_region
    _
  $region13: #{label_net.4} parent=0 // pred_fallthru
    _
  // Predicated region
  $region14: #{label_net.4} parent=0 // pred_check
    _
  $region15: #{label_net.4} parent=0 // pred_check_branch
    %207 = sbr.rel (0) target = $region17
  $region16: #{label_net.4} parent=0 // pred_region
    _
  $region17: #{label_net.4} parent=0 // pred_fallthru
    _

// kernel: label_net.5
$region0: #{label_net.5}
  #allocation0 [shape = 'u32[]', space=smem, size = 0x4, offset = 0x4, fixed_abs, tag = 'smem constant byte address 0x4 - core index']
  #allocation1 [shape = 'u32[144,128]{1,0:T(1,128)}', space=vmem, size = 0x12000, scoped, tag = 'internal scratch']
  #allocation2 [shape = 'f32[128,128]{1,0:T(8,128)}', space=vmem, size = 0x10000, scoped, tag = 'scratch operand']
  %s0 = inlined_call_operand.vmem [shape: bf16[128,128], index: 0, kind: input, shape index: {}]
  %s1 = inlined_call_operand.vmem [shape: f32[128,128], index: 1, kind: input, shape index: {}]
  %s2 = inlined_call_operand.vmem [shape: f32[1,128], index: 2, kind: input, shape index: {}]
  %s3 = inlined_call_operand.vmem [shape: f32[128,128], index: 3, kind: output, shape index: {}]
  %s4 = sld [smem:[#allocation0]]
  $region30: #{label_net.5} parent=0
    _
  %s6 = ssub.s32 1, %s4
  %s7 = scalar_select 0, %s6, %s4
  // Predicated region
  $region2: #{label_net.5} parent=0 // pred_check
    _
  $region3: #{label_net.5} parent=0 // pred_check_branch
    %9 = sbr.rel (0) target = $region5
  $region4: #{label_net.5} parent=0 // pred_region
    _
  $region5: #{label_net.5} parent=0 // pred_fallthru
    _
  // Predicated region
  $region6: #{label_net.5} parent=0 // pred_check
    _
  $region7: #{label_net.5} parent=0 // pred_check_branch
    %11 = sbr.rel (0) target = $region9
  $region8: #{label_net.5} parent=0 // pred_region
    _
  $region9: #{label_net.5} parent=0 // pred_fallthru
    _
  // Predicated region
  $region10: #{label_net.5} parent=0 // pred_check
    _
  $region11: #{label_net.5} parent=0 // pred_check_branch
    %13 = sbr.rel (0) target = $region13
  $region12: #{label_net.5} parent=0 // pred_region
    _
  $region13: #{label_net.5} parent=0 // pred_fallthru
    _
  %p14 = scmp.eq.s32.totalorder 0, 0
  // Predicated region
  $region14: #{label_net.5} parent=0 // pred_check
    %p15 = pneg %p14
  $region15: #{label_net.5} parent=0 // pred_check_branch
    %17 = sbr.rel (%p15) target = $region17
  $region16: #{label_net.5} parent=0 // pred_region
    %18 = vst [vmem:[#allocation2] sm:$0xff] 0.0
    %19 = vst [vmem:[#allocation2 + $0x8] sm:$0xff] 0.0
    %20 = vst [vmem:[#allocation2 + $0x10] sm:$0xff] 0.0
    %21 = vst [vmem:[#allocation2 + $0x18] sm:$0xff] 0.0
    %22 = vst [vmem:[#allocation2 + $0x20] sm:$0xff] 0.0
    %23 = vst [vmem:[#allocation2 + $0x28] sm:$0xff] 0.0
    %24 = vst [vmem:[#allocation2 + $0x30] sm:$0xff] 0.0
    %25 = vst [vmem:[#allocation2 + $0x38] sm:$0xff] 0.0
    %26 = vst [vmem:[#allocation2 + $0x40] sm:$0xff] 0.0
    %27 = vst [vmem:[#allocation2 + $0x48] sm:$0xff] 0.0
    %28 = vst [vmem:[#allocation2 + $0x50] sm:$0xff] 0.0
    %29 = vst [vmem:[#allocation2 + $0x58] sm:$0xff] 0.0
    %30 = vst [vmem:[#allocation2 + $0x60] sm:$0xff] 0.0
    %31 = vst [vmem:[#allocation2 + $0x68] sm:$0xff] 0.0
    %32 = vst [vmem:[#allocation2 + $0x70] sm:$0xff] 0.0
    %33 = vst [vmem:[#allocation2 + $0x78] sm:$0xff] 0.0
  $region17: #{label_net.5} parent=0 // pred_fallthru
    _
  %v34 = vld [vmem:[%s0] sm:$0xf]
  %v35 = vld [vmem:[%s0 + $0x4] sm:$0xf]
  %v36 = vld [vmem:[%s0 + $0x8] sm:$0xf]
  %v37 = vld [vmem:[%s0 + $0xc] sm:$0xf]
  %v38 = vld [vmem:[%s0 + $0x10] sm:$0xf]
  %v39 = vld [vmem:[%s0 + $0x14] sm:$0xf]
  %v40 = vld [vmem:[%s0 + $0x18] sm:$0xf]
  %v41 = vld [vmem:[%s0 + $0x1c] sm:$0xf]
  %v42 = vld [vmem:[%s0 + $0x20] sm:$0xf]
  %v43 = vld [vmem:[%s0 + $0x24] sm:$0xf]
  %v44 = vld [vmem:[%s0 + $0x28] sm:$0xf]
  %v45 = vld [vmem:[%s0 + $0x2c] sm:$0xf]
  %v46 = vld [vmem:[%s0 + $0x30] sm:$0xf]
  %v47 = vld [vmem:[%s0 + $0x34] sm:$0xf]
  %v48 = vld [vmem:[%s0 + $0x38] sm:$0xf]
  %v49 = vld [vmem:[%s0 + $0x3c] sm:$0xf]
  %v50 = vunpack.c.l.bf16 %v34
  %v51 = vunpack.c.l.bf16 %v35
  %v52 = vunpack.c.l.bf16 %v36
  %v53 = vunpack.c.l.bf16 %v37
  %v54 = vunpack.c.l.bf16 %v38
  %v55 = vunpack.c.l.bf16 %v39
  %v56 = vunpack.c.l.bf16 %v40
  %v57 = vunpack.c.l.bf16 %v41
  %v58 = vunpack.c.l.bf16 %v42
  %v59 = vunpack.c.l.bf16 %v43
  %v60 = vunpack.c.l.bf16 %v44
  %v61 = vunpack.c.l.bf16 %v45
  %v62 = vunpack.c.l.bf16 %v46
  %v63 = vunpack.c.l.bf16 %v47
  %v64 = vunpack.c.l.bf16 %v48
  %v65 = vunpack.c.l.bf16 %v49
  %v66 = vld [vmem:[#allocation2] sm:$0xff]
  %v67 = vld [vmem:[#allocation2 + $0x8] sm:$0xff]
  %v68 = vld [vmem:[#allocation2 + $0x10] sm:$0xff]
  %v69 = vld [vmem:[#allocation2 + $0x18] sm:$0xff]
  %v70 = vld [vmem:[#allocation2 + $0x20] sm:$0xff]
  %v71 = vld [vmem:[#allocation2 + $0x28] sm:$0xff]
  %v72 = vld [vmem:[#allocation2 + $0x30] sm:$0xff]
  %v73 = vld [vmem:[#allocation2 + $0x38] sm:$0xff]
  %v74 = vld [vmem:[#allocation2 + $0x40] sm:$0xff]
  %v75 = vld [vmem:[#allocation2 + $0x48] sm:$0xff]
  %v76 = vld [vmem:[#allocation2 + $0x50] sm:$0xff]
  %v77 = vld [vmem:[#allocation2 + $0x58] sm:$0xff]
  %v78 = vld [vmem:[#allocation2 + $0x60] sm:$0xff]
  %v79 = vld [vmem:[#allocation2 + $0x68] sm:$0xff]
  %v80 = vld [vmem:[#allocation2 + $0x70] sm:$0xff]
  %v81 = vld [vmem:[#allocation2 + $0x78] sm:$0xff]
  %v82 = vld [vmem:[%s1] sm:$0xff]
  %v83 = vld [vmem:[%s1 + $0x8] sm:$0xff]
  %v84 = vld [vmem:[%s1 + $0x10] sm:$0xff]
  %v85 = vld [vmem:[%s1 + $0x18] sm:$0xff]
  %v86 = vld [vmem:[%s1 + $0x20] sm:$0xff]
  %v87 = vld [vmem:[%s1 + $0x28] sm:$0xff]
  %v88 = vld [vmem:[%s1 + $0x30] sm:$0xff]
  %v89 = vld [vmem:[%s1 + $0x38] sm:$0xff]
  %v90 = vld [vmem:[%s1 + $0x40] sm:$0xff]
  %v91 = vld [vmem:[%s1 + $0x48] sm:$0xff]
  %v92 = vld [vmem:[%s1 + $0x50] sm:$0xff]
  %v93 = vld [vmem:[%s1 + $0x58] sm:$0xff]
  %v94 = vld [vmem:[%s1 + $0x60] sm:$0xff]
  %v95 = vld [vmem:[%s1 + $0x68] sm:$0xff]
  %v96 = vld [vmem:[%s1 + $0x70] sm:$0xff]
  %v97 = vld [vmem:[%s1 + $0x78] sm:$0xff]
  %98 = vmatprep.subr.mxu0 0.0
  %99 = vmatpush1.msra.mxu0 %v82
  %100 = vmatprep.subr.mxu0 0.0
  %101 = vmatpush1.msra.mxu0 %v83
  %102 = vmatprep.subr.mxu0 0.0
  %103 = vmatpush1.msra.mxu0 %v84
  %104 = vmatprep.subr.mxu0 0.0
  %105 = vmatpush1.msra.mxu0 %v85
  %106 = vmatprep.subr.mxu0 0.0
  %107 = vmatpush1.msra.mxu0 %v86
  %108 = vmatprep.subr.mxu0 0.0
  %109 = vmatpush1.msra.mxu0 %v87
  %110 = vmatprep.subr.mxu0 0.0
  %111 = vmatpush1.msra.mxu0 %v88
  %112 = vmatprep.subr.mxu0 0.0
  %113 = vmatpush1.msra.mxu0 %v89
  %114 = vmatprep.subr.mxu0 0.0
  %115 = vmatpush1.msra.mxu0 %v90
  %116 = vmatprep.subr.mxu0 0.0
  %117 = vmatpush1.msra.mxu0 %v91
  %118 = vmatprep.subr.mxu0 0.0
  %119 = vmatpush1.msra.mxu0 %v92
  %120 = vmatprep.subr.mxu0 0.0
  %121 = vmatpush1.msra.mxu0 %v93
  %122 = vmatprep.subr.mxu0 0.0
  %123 = vmatpush1.msra.mxu0 %v94
  %124 = vmatprep.subr.mxu0 0.0
  %125 = vmatpush1.msra.mxu0 %v95
  %126 = vmatprep.subr.mxu0 0.0
  %127 = vmatpush1.msra.mxu0 %v96
  %128 = vmatprep.subr.mxu0 0.0
  %129 = vmatpush1.msra.mxu0 %v97
  %130 = vmatprep.subr.mxu0 0.0
  %131 = vmatpush1.msra.mxu0 0.0
  %132 = vmatprep.subr.mxu0 0.0
  %133 = vmatpush1.msra.mxu0 0.0
  %134 = vmatprep.subr.mxu0 0.0
  %135 = vmatpush1.msra.mxu0 0.0
  %136 = vmatprep.subr.mxu0 0.0
  %137 = vmatpush1.msra.mxu0 0.0
  %138 = vmatprep.subr.mxu0 0.0
  %139 = vmatpush1.msra.mxu0 0.0
  %140 = vmatprep.subr.mxu0 0.0
  %141 = vmatpush1.msra.mxu0 0.0
  %142 = vmatprep.subr.mxu0 0.0
  %143 = vmatpush1.msra.mxu0 0.0
  %144 = vmatprep.subr.mxu0 0.0
  %145 = vmatpush1.msra.mxu0 0.0
  %146 = vmatprep.subr.mxu0 0.0
  %147 = vmatpush1.msra.mxu0 0.0
  %148 = vmatprep.subr.mxu0 0.0
  %149 = vmatpush1.msra.mxu0 0.0
  %150 = vmatprep.subr.mxu0 0.0
  %151 = vmatpush1.msra.mxu0 0.0
  %152 = vmatprep.subr.mxu0 0.0
  %153 = vmatpush1.msra.mxu0 0.0
  %154 = vmatprep.subr.mxu0 0.0
  %155 = vmatpush1.msra.mxu0 0.0
  %156 = vmatprep.subr.mxu0 0.0
  %157 = vmatpush1.msra.mxu0 0.0
  %158 = vmatprep.subr.mxu0 0.0
  %159 = vmatpush1.msra.mxu0 0.0
  %160 = vmatprep.subr.mxu0 0.0
  %161 = vmatpush1.msra.mxu0 0.0
  %162 = vmatprep.mubr.f32.mxu0 0.0
  %163 = vmatmul.mubr.f32.gmra.mrb[0].mxu0 %v50
  %v164 = vpop.f32.mrb[0].mxu0
  %v165 = vadd.f32 0.0, %v164
  %v166 = vpop.f32.mrb[0].mxu0
  %167 = vmatprep.mubr.f32.mxu0 0.0
  %168 = vmatmul.mubr.f32.gmra.mrb[0].mxu0 %v51
  %v169 = vpop.f32.mrb[0].mxu0
  %v170 = vadd.f32 0.0, %v169
  %v171 = vpop.f32.mrb[0].mxu0
  %172 = vmatprep.mubr.f32.mxu0 0.0
  %173 = vmatmul.mubr.f32.gmra.mrb[0].mxu0 %v52
  %v174 = vpop.f32.mrb[0].mxu0
  %v175 = vadd.f32 0.0, %v174
  %v176 = vpop.f32.mrb[0].mxu0
  %177 = vmatprep.mubr.f32.mxu0 0.0
  %178 = vmatmul.mubr.f32.gmra.mrb[0].mxu0 %v53
  %v179 = vpop.f32.mrb[0].mxu0
  %v180 = vadd.f32 0.0, %v179
  %v181 = vpop.f32.mrb[0].mxu0
  %182 = vmatprep.mubr.f32.mxu0 0.0
  %183 = vmatmul.mubr.f32.gmra.mrb[0].mxu0 %v54
  %v184 = vpop.f32.mrb[0].mxu0
  %v185 = vadd.f32 0.0, %v184
  %v186 = vpop.f32.mrb[0].mxu0
  %187 = vmatprep.mubr.f32.mxu0 0.0
  %188 = vmatmul.mubr.f32.gmra.mrb[0].mxu0 %v55
  %v189 = vpop.f32.mrb[0].mxu0
  %v190 = vadd.f32 0.0, %v189
  %v191 = vpop.f32.mrb[0].mxu0
  %192 = vmatprep.mubr.f32.mxu0 0.0
  %193 = vmatmul.mubr.f32.gmra.mrb[0].mxu0 %v56
  %v194 = vpop.f32.mrb[0].mxu0
  %v195 = vadd.f32 0.0, %v194
  %v196 = vpop.f32.mrb[0].mxu0
  %197 = vmatprep.mubr.f32.mxu0 0.0
  %198 = vmatmul.mubr.f32.gmra.mrb[0].mxu0 %v57
  %v199 = vpop.f32.mrb[0].mxu0
  %v200 = vadd.f32 0.0, %v199
  %v201 = vpop.f32.mrb[0].mxu0
  %202 = vmatprep.mubr.f32.mxu0 0.0
  %203 = vmatmul.mubr.f32.gmra.mrb[0].mxu0 %v58
  %v204 = vpop.f32.mrb[0].mxu0
  %v205 = vadd.f32 0.0, %v204
  %v206 = vpop.f32.mrb[0].mxu0
  %207 = vmatprep.mubr.f32.mxu0 0.0
  %208 = vmatmul.mubr.f32.gmra.mrb[0].mxu0 %v59
  %v209 = vpop.f32.mrb[0].mxu0
  %v210 = vadd.f32 0.0, %v209
  %v211 = vpop.f32.mrb[0].mxu0
  %212 = vmatprep.mubr.f32.mxu0 0.0
  %213 = vmatmul.mubr.f32.gmra.mrb[0].mxu0 %v60
  %v214 = vpop.f32.mrb[0].mxu0
  %v215 = vadd.f32 0.0, %v214
  %v216 = vpop.f32.mrb[0].mxu0
  %217 = vmatprep.mubr.f32.mxu0 0.0
  %218 = vmatmul.mubr.f32.gmra.mrb[0].mxu0 %v61
  %v219 = vpop.f32.mrb[0].mxu0
  %v220 = vadd.f32 0.0, %v219
  %v221 = vpop.f32.mrb[0].mxu0
  %222 = vmatprep.mubr.f32.mxu0 0.0
  %223 = vmatmul.mubr.f32.gmra.mrb[0].mxu0 %v62
  %v224 = vpop.f32.mrb[0].mxu0
  %v225 = vadd.f32 0.0, %v224
  %v226 = vpop.f32.mrb[0].mxu0
  %227 = vmatprep.mubr.f32.mxu0 0.0
  %228 = vmatmul.mubr.f32.gmra.mrb[0].mxu0 %v63
  %v229 = vpop.f32.mrb[0].mxu0
  %v230 = vadd.f32 0.0, %v229
  %v231 = vpop.f32.mrb[0].mxu0
  %232 = vmatprep.mubr.f32.mxu0 0.0
  %233 = vmatmul.mubr.f32.gmra.mrb[0].mxu0 %v64
  %v234 = vpop.f32.mrb[0].mxu0
  %v235 = vadd.f32 0.0, %v234
  %v236 = vpop.f32.mrb[0].mxu0
  %237 = vmatprep.mubr.f32.mxu0 0.0
  %238 = vmatmul.mubr.f32.gmra.mrb[0].mxu0 %v65
  %v239 = vpop.f32.mrb[0].mxu0
  %v240 = vadd.f32 0.0, %v239
  %v241 = vpop.f32.mrb[0].mxu0
  %242 = vdwg.mxu0
  %v243 = vadd.f32 %v66, %v165
  %v244 = vadd.f32 %v67, %v170
  %v245 = vadd.f32 %v68, %v175
  %v246 = vadd.f32 %v69, %v180
  %v247 = vadd.f32 %v70, %v185
  %v248 = vadd.f32 %v71, %v190
  %v249 = vadd.f32 %v72, %v195
  %v250 = vadd.f32 %v73, %v200
  %v251 = vadd.f32 %v74, %v205
  %v252 = vadd.f32 %v75, %v210
  %v253 = vadd.f32 %v76, %v215
  %v254 = vadd.f32 %v77, %v220
  %v255 = vadd.f32 %v78, %v225
  %v256 = vadd.f32 %v79, %v230
  %v257 = vadd.f32 %v80, %v235
  %v258 = vadd.f32 %v81, %v240
  %259 = vst [vmem:[#allocation2] sm:$0xff] %v243
  %260 = vst [vmem:[#allocation2 + $0x8] sm:$0xff] %v244
  %261 = vst [vmem:[#allocation2 + $0x10] sm:$0xff] %v245
  %262 = vst [vmem:[#allocation2 + $0x18] sm:$0xff] %v246
  %263 = vst [vmem:[#allocation2 + $0x20] sm:$0xff] %v247
  %264 = vst [vmem:[#allocation2 + $0x28] sm:$0xff] %v248
  %265 = vst [vmem:[#allocation2 + $0x30] sm:$0xff] %v249
  %266 = vst [vmem:[#allocation2 + $0x38] sm:$0xff] %v250
  %267 = vst [vmem:[#allocation2 + $0x40] sm:$0xff] %v251
  %268 = vst [vmem:[#allocation2 + $0x48] sm:$0xff] %v252
  %269 = vst [vmem:[#allocation2 + $0x50] sm:$0xff] %v253
  %270 = vst [vmem:[#allocation2 + $0x58] sm:$0xff] %v254
  %271 = vst [vmem:[#allocation2 + $0x60] sm:$0xff] %v255
  %272 = vst [vmem:[#allocation2 + $0x68] sm:$0xff] %v256
  %273 = vst [vmem:[#allocation2 + $0x70] sm:$0xff] %v257
  %274 = vst [vmem:[#allocation2 + $0x78] sm:$0xff] %v258
  // Predicated region
  $region18: #{label_net.5} parent=0 // pred_check
    %p275 = pneg %p14
  $region19: #{label_net.5} parent=0 // pred_check_branch
    %277 = sbr.rel (%p275) target = $region21
  $region20: #{label_net.5} parent=0 // pred_region
    %v278 = vld [vmem:[#allocation2] sm:$0xff]
    %v279 = vld [vmem:[#allocation2 + $0x8] sm:$0xff]
    %v280 = vld [vmem:[#allocation2 + $0x10] sm:$0xff]
    %v281 = vld [vmem:[#allocation2 + $0x18] sm:$0xff]
    %v282 = vld [vmem:[#allocation2 + $0x20] sm:$0xff]
    %v283 = vld [vmem:[#allocation2 + $0x28] sm:$0xff]
    %v284 = vld [vmem:[#allocation2 + $0x30] sm:$0xff]
    %v285 = vld [vmem:[#allocation2 + $0x38] sm:$0xff]
    %v286 = vld [vmem:[#allocation2 + $0x40] sm:$0xff]
    %v287 = vld [vmem:[#allocation2 + $0x48] sm:$0xff]
    %v288 = vld [vmem:[#allocation2 + $0x50] sm:$0xff]
    %v289 = vld [vmem:[#allocation2 + $0x58] sm:$0xff]
    %v290 = vld [vmem:[#allocation2 + $0x60] sm:$0xff]
    %v291 = vld [vmem:[#allocation2 + $0x68] sm:$0xff]
    %v292 = vld [vmem:[#allocation2 + $0x70] sm:$0xff]
    %v293 = vld [vmem:[#allocation2 + $0x78] sm:$0xff]
    %v294 = vld [vmem:[%s2] sm:$0x1]
    %v296 = vlaneseq
    %v297 = vshrl.u32 %v296, 7
    %v298 = vsub.s32 0, %v297
    %v299 = vrot.slane %v294, %v298
    %v301 = vadd.f32 %v278, %v299
    %v302 = vadd.f32 %v279, %v299
    %v303 = vadd.f32 %v280, %v299
    %v304 = vadd.f32 %v281, %v299
    %v305 = vadd.f32 %v282, %v299
    %v306 = vadd.f32 %v283, %v299
    %v307 = vadd.f32 %v284, %v299
    %v308 = vadd.f32 %v285, %v299
    %v309 = vadd.f32 %v286, %v299
    %v310 = vadd.f32 %v287, %v299
    %v311 = vadd.f32 %v288, %v299
    %v312 = vadd.f32 %v289, %v299
    %v313 = vadd.f32 %v290, %v299
    %v314 = vadd.f32 %v291, %v299
    %v315 = vadd.f32 %v292, %v299
    %v316 = vadd.f32 %v293, %v299
    %317 = vst [vmem:[%s3] sm:$0xff] %v301
    %318 = vst [vmem:[%s3 + $0x8] sm:$0xff] %v302
    %319 = vst [vmem:[%s3 + $0x10] sm:$0xff] %v303
    %320 = vst [vmem:[%s3 + $0x18] sm:$0xff] %v304
    %321 = vst [vmem:[%s3 + $0x20] sm:$0xff] %v305
    %322 = vst [vmem:[%s3 + $0x28] sm:$0xff] %v306
    %323 = vst [vmem:[%s3 + $0x30] sm:$0xff] %v307
    %324 = vst [vmem:[%s3 + $0x38] sm:$0xff] %v308
    %325 = vst [vmem:[%s3 + $0x40] sm:$0xff] %v309
    %326 = vst [vmem:[%s3 + $0x48] sm:$0xff] %v310
    %327 = vst [vmem:[%s3 + $0x50] sm:$0xff] %v311
    %328 = vst [vmem:[%s3 + $0x58] sm:$0xff] %v312
    %329 = vst [vmem:[%s3 + $0x60] sm:$0xff] %v313
    %330 = vst [vmem:[%s3 + $0x68] sm:$0xff] %v314
    %331 = vst [vmem:[%s3 + $0x70] sm:$0xff] %v315
    %332 = vst [vmem:[%s3 + $0x78] sm:$0xff] %v316
  $region21: #{label_net.5} parent=0 // pred_fallthru
    _
  // Predicated region
  $region22: #{label_net.5} parent=0 // pred_check
    _
  $region23: #{label_net.5} parent=0 // pred_check_branch
    %334 = sbr.rel (0) target = $region25
  $region24: #{label_net.5} parent=0 // pred_region
    _
  $region25: #{label_net.5} parent=0 // pred_fallthru
    _
  // Predicated region
  $region26: #{label_net.5} parent=0 // pred_check
    _
  $region27: #{label_net.5} parent=0 // pred_check_branch
    %336 = sbr.rel (0) target = $region29
  $region28: #{label_net.5} parent=0 // pred_region
    _
  $region29: #{label_net.5} parent=0 // pred_fallthru
    _

// kernel: label_net.3
$region0: #{label_net.3}
  #allocation0 [shape = 'u32[]', space=smem, size = 0x4, offset = 0x4, fixed_abs, tag = 'smem constant byte address 0x4 - core index']
  #allocation1 [shape = 'u32[144,128]{1,0:T(1,128)}', space=vmem, size = 0x12000, scoped, tag = 'internal scratch']
  #allocation2 [shape = 'f32[128,128]{1,0:T(8,128)}', space=vmem, size = 0x10000, scoped, tag = 'scratch operand']
  %s0 = inlined_call_operand.vmem [shape: bf16[128,128], index: 0, kind: input, shape index: {}]
  %s1 = inlined_call_operand.vmem [shape: f32[128,128], index: 1, kind: input, shape index: {}]
  %s2 = inlined_call_operand.vmem [shape: f32[128,128], index: 2, kind: input, shape index: {}]
  %s3 = inlined_call_operand.vmem [shape: f32[1,128], index: 3, kind: input, shape index: {}]
  %s4 = inlined_call_operand.vmem [shape: f32[128,128], index: 4, kind: output, shape index: {}]
  %s5 = sld [smem:[#allocation0]]
  $region34: #{label_net.3} parent=0
    _
  %s7 = ssub.s32 1, %s5
  %s8 = scalar_select 0, %s7, %s5
  // Predicated region
  $region2: #{label_net.3} parent=0 // pred_check
    _
  $region3: #{label_net.3} parent=0 // pred_check_branch
    %10 = sbr.rel (0) target = $region5
  $region4: #{label_net.3} parent=0 // pred_region
    _
  $region5: #{label_net.3} parent=0 // pred_fallthru
    _
  // Predicated region
  $region6: #{label_net.3} parent=0 // pred_check
    _
  $region7: #{label_net.3} parent=0 // pred_check_branch
    %12 = sbr.rel (0) target = $region9
  $region8: #{label_net.3} parent=0 // pred_region
    _
  $region9: #{label_net.3} parent=0 // pred_fallthru
    _
  // Predicated region
  $region10: #{label_net.3} parent=0 // pred_check
    _
  $region11: #{label_net.3} parent=0 // pred_check_branch
    %14 = sbr.rel (0) target = $region13
  $region12: #{label_net.3} parent=0 // pred_region
    _
  $region13: #{label_net.3} parent=0 // pred_fallthru
    _
  // Predicated region
  $region14: #{label_net.3} parent=0 // pred_check
    _
  $region15: #{label_net.3} parent=0 // pred_check_branch
    %16 = sbr.rel (0) target = $region17
  $region16: #{label_net.3} parent=0 // pred_region
    _
  $region17: #{label_net.3} parent=0 // pred_fallthru
    _
  %p17 = scmp.eq.s32.totalorder 0, 0
  // Predicated region
  $region18: #{label_net.3} parent=0 // pred_check
    %p18 = pneg %p17
  $region19: #{label_net.3} parent=0 // pred_check_branch
    %20 = sbr.rel (%p18) target = $region21
  $region20: #{label_net.3} parent=0 // pred_region
    %21 = vst [vmem:[#allocation2] sm:$0xff] 0.0
    %22 = vst [vmem:[#allocation2 + $0x8] sm:$0xff] 0.0
    %23 = vst [vmem:[#allocation2 + $0x10] sm:$0xff] 0.0
    %24 = vst [vmem:[#allocation2 + $0x18] sm:$0xff] 0.0
    %25 = vst [vmem:[#allocation2 + $0x20] sm:$0xff] 0.0
    %26 = vst [vmem:[#allocation2 + $0x28] sm:$0xff] 0.0
    %27 = vst [vmem:[#allocation2 + $0x30] sm:$0xff] 0.0
    %28 = vst [vmem:[#allocation2 + $0x38] sm:$0xff] 0.0
    %29 = vst [vmem:[#allocation2 + $0x40] sm:$0xff] 0.0
    %30 = vst [vmem:[#allocation2 + $0x48] sm:$0xff] 0.0
    %31 = vst [vmem:[#allocation2 + $0x50] sm:$0xff] 0.0
    %32 = vst [vmem:[#allocation2 + $0x58] sm:$0xff] 0.0
    %33 = vst [vmem:[#allocation2 + $0x60] sm:$0xff] 0.0
    %34 = vst [vmem:[#allocation2 + $0x68] sm:$0xff] 0.0
    %35 = vst [vmem:[#allocation2 + $0x70] sm:$0xff] 0.0
    %36 = vst [vmem:[#allocation2 + $0x78] sm:$0xff] 0.0
  $region21: #{label_net.3} parent=0 // pred_fallthru
    _
  %v37 = vld [vmem:[%s0] sm:$0xf]
  %v38 = vld [vmem:[%s0 + $0x4] sm:$0xf]
  %v39 = vld [vmem:[%s0 + $0x8] sm:$0xf]
  %v40 = vld [vmem:[%s0 + $0xc] sm:$0xf]
  %v41 = vld [vmem:[%s0 + $0x10] sm:$0xf]
  %v42 = vld [vmem:[%s0 + $0x14] sm:$0xf]
  %v43 = vld [vmem:[%s0 + $0x18] sm:$0xf]
  %v44 = vld [vmem:[%s0 + $0x1c] sm:$0xf]
  %v45 = vld [vmem:[%s0 + $0x20] sm:$0xf]
  %v46 = vld [vmem:[%s0 + $0x24] sm:$0xf]
  %v47 = vld [vmem:[%s0 + $0x28] sm:$0xf]
  %v48 = vld [vmem:[%s0 + $0x2c] sm:$0xf]
  %v49 = vld [vmem:[%s0 + $0x30] sm:$0xf]
  %v50 = vld [vmem:[%s0 + $0x34] sm:$0xf]
  %v51 = vld [vmem:[%s0 + $0x38] sm:$0xf]
  %v52 = vld [vmem:[%s0 + $0x3c] sm:$0xf]
  %v53 = vunpack.c.l.bf16 %v37
  %v54 = vunpack.c.l.bf16 %v38
  %v55 = vunpack.c.l.bf16 %v39
  %v56 = vunpack.c.l.bf16 %v40
  %v57 = vunpack.c.l.bf16 %v41
  %v58 = vunpack.c.l.bf16 %v42
  %v59 = vunpack.c.l.bf16 %v43
  %v60 = vunpack.c.l.bf16 %v44
  %v61 = vunpack.c.l.bf16 %v45
  %v62 = vunpack.c.l.bf16 %v46
  %v63 = vunpack.c.l.bf16 %v47
  %v64 = vunpack.c.l.bf16 %v48
  %v65 = vunpack.c.l.bf16 %v49
  %v66 = vunpack.c.l.bf16 %v50
  %v67 = vunpack.c.l.bf16 %v51
  %v68 = vunpack.c.l.bf16 %v52
  %v69 = vld [vmem:[#allocation2] sm:$0xff]
  %v70 = vld [vmem:[#allocation2 + $0x8] sm:$0xff]
  %v71 = vld [vmem:[#allocation2 + $0x10] sm:$0xff]
  %v72 = vld [vmem:[#allocation2 + $0x18] sm:$0xff]
  %v73 = vld [vmem:[#allocation2 + $0x20] sm:$0xff]
  %v74 = vld [vmem:[#allocation2 + $0x28] sm:$0xff]
  %v75 = vld [vmem:[#allocation2 + $0x30] sm:$0xff]
  %v76 = vld [vmem:[#allocation2 + $0x38] sm:$0xff]
  %v77 = vld [vmem:[#allocation2 + $0x40] sm:$0xff]
  %v78 = vld [vmem:[#allocation2 + $0x48] sm:$0xff]
  %v79 = vld [vmem:[#allocation2 + $0x50] sm:$0xff]
  %v80 = vld [vmem:[#allocation2 + $0x58] sm:$0xff]
  %v81 = vld [vmem:[#allocation2 + $0x60] sm:$0xff]
  %v82 = vld [vmem:[#allocation2 + $0x68] sm:$0xff]
  %v83 = vld [vmem:[#allocation2 + $0x70] sm:$0xff]
  %v84 = vld [vmem:[#allocation2 + $0x78] sm:$0xff]
  %v85 = vld [vmem:[%s1] sm:$0xff]
  %v86 = vld [vmem:[%s1 + $0x8] sm:$0xff]
  %v87 = vld [vmem:[%s1 + $0x10] sm:$0xff]
  %v88 = vld [vmem:[%s1 + $0x18] sm:$0xff]
  %v89 = vld [vmem:[%s1 + $0x20] sm:$0xff]
  %v90 = vld [vmem:[%s1 + $0x28] sm:$0xff]
  %v91 = vld [vmem:[%s1 + $0x30] sm:$0xff]
  %v92 = vld [vmem:[%s1 + $0x38] sm:$0xff]
  %v93 = vld [vmem:[%s1 + $0x40] sm:$0xff]
  %v94 = vld [vmem:[%s1 + $0x48] sm:$0xff]
  %v95 = vld [vmem:[%s1 + $0x50] sm:$0xff]
  %v96 = vld [vmem:[%s1 + $0x58] sm:$0xff]
  %v97 = vld [vmem:[%s1 + $0x60] sm:$0xff]
  %v98 = vld [vmem:[%s1 + $0x68] sm:$0xff]
  %v99 = vld [vmem:[%s1 + $0x70] sm:$0xff]
  %v100 = vld [vmem:[%s1 + $0x78] sm:$0xff]
  %101 = vmatprep.subr.mxu0 0.0
  %102 = vmatpush1.msra.mxu0 %v85
  %103 = vmatprep.subr.mxu0 0.0
  %104 = vmatpush1.msra.mxu0 %v86
  %105 = vmatprep.subr.mxu0 0.0
  %106 = vmatpush1.msra.mxu0 %v87
  %107 = vmatprep.subr.mxu0 0.0
  %108 = vmatpush1.msra.mxu0 %v88
  %109 = vmatprep.subr.mxu0 0.0
  %110 = vmatpush1.msra.mxu0 %v89
  %111 = vmatprep.subr.mxu0 0.0
  %112 = vmatpush1.msra.mxu0 %v90
  %113 = vmatprep.subr.mxu0 0.0
  %114 = vmatpush1.msra.mxu0 %v91
  %115 = vmatprep.subr.mxu0 0.0
  %116 = vmatpush1.msra.mxu0 %v92
  %117 = vmatprep.subr.mxu0 0.0
  %118 = vmatpush1.msra.mxu0 %v93
  %119 = vmatprep.subr.mxu0 0.0
  %120 = vmatpush1.msra.mxu0 %v94
  %121 = vmatprep.subr.mxu0 0.0
  %122 = vmatpush1.msra.mxu0 %v95
  %123 = vmatprep.subr.mxu0 0.0
  %124 = vmatpush1.msra.mxu0 %v96
  %125 = vmatprep.subr.mxu0 0.0
  %126 = vmatpush1.msra.mxu0 %v97
  %127 = vmatprep.subr.mxu0 0.0
  %128 = vmatpush1.msra.mxu0 %v98
  %129 = vmatprep.subr.mxu0 0.0
  %130 = vmatpush1.msra.mxu0 %v99
  %131 = vmatprep.subr.mxu0 0.0
  %132 = vmatpush1.msra.mxu0 %v100
  %133 = vmatprep.subr.mxu0 0.0
  %134 = vmatpush1.msra.mxu0 0.0
  %135 = vmatprep.subr.mxu0 0.0
  %136 = vmatpush1.msra.mxu0 0.0
  %137 = vmatprep.subr.mxu0 0.0
  %138 = vmatpush1.msra.mxu0 0.0
  %139 = vmatprep.subr.mxu0 0.0
  %140 = vmatpush1.msra.mxu0 0.0
  %141 = vmatprep.subr.mxu0 0.0
  %142 = vmatpush1.msra.mxu0 0.0
  %143 = vmatprep.subr.mxu0 0.0
  %144 = vmatpush1.msra.mxu0 0.0
  %145 = vmatprep.subr.mxu0 0.0
  %146 = vmatpush1.msra.mxu0 0.0
  %147 = vmatprep.subr.mxu0 0.0
  %148 = vmatpush1.msra.mxu0 0.0
  %149 = vmatprep.subr.mxu0 0.0
  %150 = vmatpush1.msra.mxu0 0.0
  %151 = vmatprep.subr.mxu0 0.0
  %152 = vmatpush1.msra.mxu0 0.0
  %153 = vmatprep.subr.mxu0 0.0
  %154 = vmatpush1.msra.mxu0 0.0
  %155 = vmatprep.subr.mxu0 0.0
  %156 = vmatpush1.msra.mxu0 0.0
  %157 = vmatprep.subr.mxu0 0.0
  %158 = vmatpush1.msra.mxu0 0.0
  %159 = vmatprep.subr.mxu0 0.0
  %160 = vmatpush1.msra.mxu0 0.0
  %161 = vmatprep.subr.mxu0 0.0
  %162 = vmatpush1.msra.mxu0 0.0
  %163 = vmatprep.subr.mxu0 0.0
  %164 = vmatpush1.msra.mxu0 0.0
  %165 = vmatprep.mubr.f32.mxu0 0.0
  %166 = vmatmul.mubr.f32.gmra.mrb[0].mxu0 %v53
  %v167 = vpop.f32.mrb[0].mxu0
  %v168 = vadd.f32 0.0, %v167
  %v169 = vpop.f32.mrb[0].mxu0
  %170 = vmatprep.mubr.f32.mxu0 0.0
  %171 = vmatmul.mubr.f32.gmra.mrb[0].mxu0 %v54
  %v172 = vpop.f32.mrb[0].mxu0
  %v173 = vadd.f32 0.0, %v172
  %v174 = vpop.f32.mrb[0].mxu0
  %175 = vmatprep.mubr.f32.mxu0 0.0
  %176 = vmatmul.mubr.f32.gmra.mrb[0].mxu0 %v55
  %v177 = vpop.f32.mrb[0].mxu0
  %v178 = vadd.f32 0.0, %v177
  %v179 = vpop.f32.mrb[0].mxu0
  %180 = vmatprep.mubr.f32.mxu0 0.0
  %181 = vmatmul.mubr.f32.gmra.mrb[0].mxu0 %v56
  %v182 = vpop.f32.mrb[0].mxu0
  %v183 = vadd.f32 0.0, %v182
  %v184 = vpop.f32.mrb[0].mxu0
  %185 = vmatprep.mubr.f32.mxu0 0.0
  %186 = vmatmul.mubr.f32.gmra.mrb[0].mxu0 %v57
  %v187 = vpop.f32.mrb[0].mxu0
  %v188 = vadd.f32 0.0, %v187
  %v189 = vpop.f32.mrb[0].mxu0
  %190 = vmatprep.mubr.f32.mxu0 0.0
  %191 = vmatmul.mubr.f32.gmra.mrb[0].mxu0 %v58
  %v192 = vpop.f32.mrb[0].mxu0
  %v193 = vadd.f32 0.0, %v192
  %v194 = vpop.f32.mrb[0].mxu0
  %195 = vmatprep.mubr.f32.mxu0 0.0
  %196 = vmatmul.mubr.f32.gmra.mrb[0].mxu0 %v59
  %v197 = vpop.f32.mrb[0].mxu0
  %v198 = vadd.f32 0.0, %v197
  %v199 = vpop.f32.mrb[0].mxu0
  %200 = vmatprep.mubr.f32.mxu0 0.0
  %201 = vmatmul.mubr.f32.gmra.mrb[0].mxu0 %v60
  %v202 = vpop.f32.mrb[0].mxu0
  %v203 = vadd.f32 0.0, %v202
  %v204 = vpop.f32.mrb[0].mxu0
  %205 = vmatprep.mubr.f32.mxu0 0.0
  %206 = vmatmul.mubr.f32.gmra.mrb[0].mxu0 %v61
  %v207 = vpop.f32.mrb[0].mxu0
  %v208 = vadd.f32 0.0, %v207
  %v209 = vpop.f32.mrb[0].mxu0
  %210 = vmatprep.mubr.f32.mxu0 0.0
  %211 = vmatmul.mubr.f32.gmra.mrb[0].mxu0 %v62
  %v212 = vpop.f32.mrb[0].mxu0
  %v213 = vadd.f32 0.0, %v212
  %v214 = vpop.f32.mrb[0].mxu0
  %215 = vmatprep.mubr.f32.mxu0 0.0
  %216 = vmatmul.mubr.f32.gmra.mrb[0].mxu0 %v63
  %v217 = vpop.f32.mrb[0].mxu0
  %v218 = vadd.f32 0.0, %v217
  %v219 = vpop.f32.mrb[0].mxu0
  %220 = vmatprep.mubr.f32.mxu0 0.0
  %221 = vmatmul.mubr.f32.gmra.mrb[0].mxu0 %v64
  %v222 = vpop.f32.mrb[0].mxu0
  %v223 = vadd.f32 0.0, %v222
  %v224 = vpop.f32.mrb[0].mxu0
  %225 = vmatprep.mubr.f32.mxu0 0.0
  %226 = vmatmul.mubr.f32.gmra.mrb[0].mxu0 %v65
  %v227 = vpop.f32.mrb[0].mxu0
  %v228 = vadd.f32 0.0, %v227
  %v229 = vpop.f32.mrb[0].mxu0
  %230 = vmatprep.mubr.f32.mxu0 0.0
  %231 = vmatmul.mubr.f32.gmra.mrb[0].mxu0 %v66
  %v232 = vpop.f32.mrb[0].mxu0
  %v233 = vadd.f32 0.0, %v232
  %v234 = vpop.f32.mrb[0].mxu0
  %235 = vmatprep.mubr.f32.mxu0 0.0
  %236 = vmatmul.mubr.f32.gmra.mrb[0].mxu0 %v67
  %v237 = vpop.f32.mrb[0].mxu0
  %v238 = vadd.f32 0.0, %v237
  %v239 = vpop.f32.mrb[0].mxu0
  %240 = vmatprep.mubr.f32.mxu0 0.0
  %241 = vmatmul.mubr.f32.gmra.mrb[0].mxu0 %v68
  %v242 = vpop.f32.mrb[0].mxu0
  %v243 = vadd.f32 0.0, %v242
  %v244 = vpop.f32.mrb[0].mxu0
  %245 = vdwg.mxu0
  %v246 = vadd.f32 %v69, %v168
  %v247 = vadd.f32 %v70, %v173
  %v248 = vadd.f32 %v71, %v178
  %v249 = vadd.f32 %v72, %v183
  %v250 = vadd.f32 %v73, %v188
  %v251 = vadd.f32 %v74, %v193
  %v252 = vadd.f32 %v75, %v198
  %v253 = vadd.f32 %v76, %v203
  %v254 = vadd.f32 %v77, %v208
  %v255 = vadd.f32 %v78, %v213
  %v256 = vadd.f32 %v79, %v218
  %v257 = vadd.f32 %v80, %v223
  %v258 = vadd.f32 %v81, %v228
  %v259 = vadd.f32 %v82, %v233
  %v260 = vadd.f32 %v83, %v238
  %v261 = vadd.f32 %v84, %v243
  %262 = vst [vmem:[#allocation2] sm:$0xff] %v246
  %263 = vst [vmem:[#allocation2 + $0x8] sm:$0xff] %v247
  %264 = vst [vmem:[#allocation2 + $0x10] sm:$0xff] %v248
  %265 = vst [vmem:[#allocation2 + $0x18] sm:$0xff] %v249
  %266 = vst [vmem:[#allocation2 + $0x20] sm:$0xff] %v250
  %267 = vst [vmem:[#allocation2 + $0x28] sm:$0xff] %v251
  %268 = vst [vmem:[#allocation2 + $0x30] sm:$0xff] %v252
  %269 = vst [vmem:[#allocation2 + $0x38] sm:$0xff] %v253
  %270 = vst [vmem:[#allocation2 + $0x40] sm:$0xff] %v254
  %271 = vst [vmem:[#allocation2 + $0x48] sm:$0xff] %v255
  %272 = vst [vmem:[#allocation2 + $0x50] sm:$0xff] %v256
  %273 = vst [vmem:[#allocation2 + $0x58] sm:$0xff] %v257
  %274 = vst [vmem:[#allocation2 + $0x60] sm:$0xff] %v258
  %275 = vst [vmem:[#allocation2 + $0x68] sm:$0xff] %v259
  %276 = vst [vmem:[#allocation2 + $0x70] sm:$0xff] %v260
  %277 = vst [vmem:[#allocation2 + $0x78] sm:$0xff] %v261
  // Predicated region
  $region22: #{label_net.3} parent=0 // pred_check
    %p278 = pneg %p17
  $region23: #{label_net.3} parent=0 // pred_check_branch
    %280 = sbr.rel (%p278) target = $region25
  $region24: #{label_net.3} parent=0 // pred_region
    %v281 = vld [vmem:[#allocation2] sm:$0xff]
    %v282 = vld [vmem:[#allocation2 + $0x8] sm:$0xff]
    %v283 = vld [vmem:[#allocation2 + $0x10] sm:$0xff]
    %v284 = vld [vmem:[#allocation2 + $0x18] sm:$0xff]
    %v285 = vld [vmem:[#allocation2 + $0x20] sm:$0xff]
    %v286 = vld [vmem:[#allocation2 + $0x28] sm:$0xff]
    %v287 = vld [vmem:[#allocation2 + $0x30] sm:$0xff]
    %v288 = vld [vmem:[#allocation2 + $0x38] sm:$0xff]
    %v289 = vld [vmem:[#allocation2 + $0x40] sm:$0xff]
    %v290 = vld [vmem:[#allocation2 + $0x48] sm:$0xff]
    %v291 = vld [vmem:[#allocation2 + $0x50] sm:$0xff]
    %v292 = vld [vmem:[#allocation2 + $0x58] sm:$0xff]
    %v293 = vld [vmem:[#allocation2 + $0x60] sm:$0xff]
    %v294 = vld [vmem:[#allocation2 + $0x68] sm:$0xff]
    %v295 = vld [vmem:[#allocation2 + $0x70] sm:$0xff]
    %v296 = vld [vmem:[#allocation2 + $0x78] sm:$0xff]
    %v297 = vld [vmem:[%s2] sm:$0xff]
    %v298 = vld [vmem:[%s2 + $0x8] sm:$0xff]
    %v299 = vld [vmem:[%s2 + $0x10] sm:$0xff]
    %v300 = vld [vmem:[%s2 + $0x18] sm:$0xff]
    %v301 = vld [vmem:[%s2 + $0x20] sm:$0xff]
    %v302 = vld [vmem:[%s2 + $0x28] sm:$0xff]
    %v303 = vld [vmem:[%s2 + $0x30] sm:$0xff]
    %v304 = vld [vmem:[%s2 + $0x38] sm:$0xff]
    %v305 = vld [vmem:[%s2 + $0x40] sm:$0xff]
    %v306 = vld [vmem:[%s2 + $0x48] sm:$0xff]
    %v307 = vld [vmem:[%s2 + $0x50] sm:$0xff]
    %v308 = vld [vmem:[%s2 + $0x58] sm:$0xff]
    %v309 = vld [vmem:[%s2 + $0x60] sm:$0xff]
    %v310 = vld [vmem:[%s2 + $0x68] sm:$0xff]
    %v311 = vld [vmem:[%s2 + $0x70] sm:$0xff]
    %v312 = vld [vmem:[%s2 + $0x78] sm:$0xff]
    %v313 = vld [vmem:[%s3] sm:$0x1]
    %v315 = vlaneseq
    %v316 = vshrl.u32 %v315, 7
    %v317 = vsub.s32 0, %v316
    %v318 = vrot.slane %v313, %v317
    %320 = vmatprep.subr.mxu0 0.0
    %321 = vmatpush1.msra.mxu0 %v297
    %322 = vmatprep.subr.mxu0 0.0
    %323 = vmatpush1.msra.mxu0 %v298
    %324 = vmatprep.subr.mxu0 0.0
    %325 = vmatpush1.msra.mxu0 %v299
    %326 = vmatprep.subr.mxu0 0.0
    %327 = vmatpush1.msra.mxu0 %v300
    %328 = vmatprep.subr.mxu0 0.0
    %329 = vmatpush1.msra.mxu0 %v301
    %330 = vmatprep.subr.mxu0 0.0
    %331 = vmatpush1.msra.mxu0 %v302
    %332 = vmatprep.subr.mxu0 0.0
    %333 = vmatpush1.msra.mxu0 %v303
    %334 = vmatprep.subr.mxu0 0.0
    %335 = vmatpush1.msra.mxu0 %v304
    %336 = vmatprep.subr.mxu0 0.0
    %337 = vmatpush1.msra.mxu0 %v305
    %338 = vmatprep.subr.mxu0 0.0
    %339 = vmatpush1.msra.mxu0 %v306
    %340 = vmatprep.subr.mxu0 0.0
    %341 = vmatpush1.msra.mxu0 %v307
    %342 = vmatprep.subr.mxu0 0.0
    %343 = vmatpush1.msra.mxu0 %v308
    %344 = vmatprep.subr.mxu0 0.0
    %345 = vmatpush1.msra.mxu0 %v309
    %346 = vmatprep.subr.mxu0 0.0
    %347 = vmatpush1.msra.mxu0 %v310
    %348 = vmatprep.subr.mxu0 0.0
    %349 = vmatpush1.msra.mxu0 %v311
    %350 = vmatprep.subr.mxu0 0.0
    %351 = vmatpush1.msra.mxu0 %v312
    %352 = vmatprep.subr.mxu0 0.0
    %353 = vmatpush1.msra.mxu0 0.0
    %354 = vmatprep.subr.mxu0 0.0
    %355 = vmatpush1.msra.mxu0 0.0
    %356 = vmatprep.subr.mxu0 0.0
    %357 = vmatpush1.msra.mxu0 0.0
    %358 = vmatprep.subr.mxu0 0.0
    %359 = vmatpush1.msra.mxu0 0.0
    %360 = vmatprep.subr.mxu0 0.0
    %361 = vmatpush1.msra.mxu0 0.0
    %362 = vmatprep.subr.mxu0 0.0
    %363 = vmatpush1.msra.mxu0 0.0
    %364 = vmatprep.subr.mxu0 0.0
    %365 = vmatpush1.msra.mxu0 0.0
    %366 = vmatprep.subr.mxu0 0.0
    %367 = vmatpush1.msra.mxu0 0.0
    %368 = vmatprep.subr.mxu0 0.0
    %369 = vmatpush1.msra.mxu0 0.0
    %370 = vmatprep.subr.mxu0 0.0
    %371 = vmatpush1.msra.mxu0 0.0
    %372 = vmatprep.subr.mxu0 0.0
    %373 = vmatpush1.msra.mxu0 0.0
    %374 = vmatprep.subr.mxu0 0.0
    %375 = vmatpush1.msra.mxu0 0.0
    %376 = vmatprep.subr.mxu0 0.0
    %377 = vmatpush1.msra.mxu0 0.0
    %378 = vmatprep.subr.mxu0 0.0
    %379 = vmatpush1.msra.mxu0 0.0
    %380 = vmatprep.subr.mxu0 0.0
    %381 = vmatpush1.msra.mxu0 0.0
    %382 = vmatprep.subr.mxu0 0.0
    %383 = vmatpush1.msra.mxu0 0.0
    %384 = vmatprep.mubr.f32.mxu0 0.0
    %385 = vmatmul.mubr.f32.gmra.mrb[0].mxu0 %v281
    %v386 = vpop.f32.mrb[0].mxu0
    %v387 = vadd.f32 %v318, %v386
    %v388 = vpop.f32.mrb[0].mxu0
    %389 = vmatprep.mubr.f32.mxu0 0.0
    %390 = vmatmul.mubr.f32.gmra.mrb[0].mxu0 %v282
    %v391 = vpop.f32.mrb[0].mxu0
    %v392 = vadd.f32 %v318, %v391
    %v393 = vpop.f32.mrb[0].mxu0
    %394 = vmatprep.mubr.f32.mxu0 0.0
    %395 = vmatmul.mubr.f32.gmra.mrb[0].mxu0 %v283
    %v396 = vpop.f32.mrb[0].mxu0
    %v397 = vadd.f32 %v318, %v396
    %v398 = vpop.f32.mrb[0].mxu0
    %399 = vmatprep.mubr.f32.mxu0 0.0
    %400 = vmatmul.mubr.f32.gmra.mrb[0].mxu0 %v284
    %v401 = vpop.f32.mrb[0].mxu0
    %v402 = vadd.f32 %v318, %v401
    %v403 = vpop.f32.mrb[0].mxu0
    %404 = vmatprep.mubr.f32.mxu0 0.0
    %405 = vmatmul.mubr.f32.gmra.mrb[0].mxu0 %v285
    %v406 = vpop.f32.mrb[0].mxu0
    %v407 = vadd.f32 %v318, %v406
    %v408 = vpop.f32.mrb[0].mxu0
    %409 = vmatprep.mubr.f32.mxu0 0.0
    %410 = vmatmul.mubr.f32.gmra.mrb[0].mxu0 %v286
    %v411 = vpop.f32.mrb[0].mxu0
    %v412 = vadd.f32 %v318, %v411
    %v413 = vpop.f32.mrb[0].mxu0
    %414 = vmatprep.mubr.f32.mxu0 0.0
    %415 = vmatmul.mubr.f32.gmra.mrb[0].mxu0 %v287
    %v416 = vpop.f32.mrb[0].mxu0
    %v417 = vadd.f32 %v318, %v416
    %v418 = vpop.f32.mrb[0].mxu0
    %419 = vmatprep.mubr.f32.mxu0 0.0
    %420 = vmatmul.mubr.f32.gmra.mrb[0].mxu0 %v288
    %v421 = vpop.f32.mrb[0].mxu0
    %v422 = vadd.f32 %v318, %v421
    %v423 = vpop.f32.mrb[0].mxu0
    %424 = vmatprep.mubr.f32.mxu0 0.0
    %425 = vmatmul.mubr.f32.gmra.mrb[0].mxu0 %v289
    %v426 = vpop.f32.mrb[0].mxu0
    %v427 = vadd.f32 %v318, %v426
    %v428 = vpop.f32.mrb[0].mxu0
    %429 = vmatprep.mubr.f32.mxu0 0.0
    %430 = vmatmul.mubr.f32.gmra.mrb[0].mxu0 %v290
    %v431 = vpop.f32.mrb[0].mxu0
    %v432 = vadd.f32 %v318, %v431
    %v433 = vpop.f32.mrb[0].mxu0
    %434 = vmatprep.mubr.f32.mxu0 0.0
    %435 = vmatmul.mubr.f32.gmra.mrb[0].mxu0 %v291
    %v436 = vpop.f32.mrb[0].mxu0
    %v437 = vadd.f32 %v318, %v436
    %v438 = vpop.f32.mrb[0].mxu0
    %439 = vmatprep.mubr.f32.mxu0 0.0
    %440 = vmatmul.mubr.f32.gmra.mrb[0].mxu0 %v292
    %v441 = vpop.f32.mrb[0].mxu0
    %v442 = vadd.f32 %v318, %v441
    %v443 = vpop.f32.mrb[0].mxu0
    %444 = vmatprep.mubr.f32.mxu0 0.0
    %445 = vmatmul.mubr.f32.gmra.mrb[0].mxu0 %v293
    %v446 = vpop.f32.mrb[0].mxu0
    %v447 = vadd.f32 %v318, %v446
    %v448 = vpop.f32.mrb[0].mxu0
    %449 = vmatprep.mubr.f32.mxu0 0.0
    %450 = vmatmul.mubr.f32.gmra.mrb[0].mxu0 %v294
    %v451 = vpop.f32.mrb[0].mxu0
    %v452 = vadd.f32 %v318, %v451
    %v453 = vpop.f32.mrb[0].mxu0
    %454 = vmatprep.mubr.f32.mxu0 0.0
    %455 = vmatmul.mubr.f32.gmra.mrb[0].mxu0 %v295
    %v456 = vpop.f32.mrb[0].mxu0
    %v457 = vadd.f32 %v318, %v456
    %v458 = vpop.f32.mrb[0].mxu0
    %459 = vmatprep.mubr.f32.mxu0 0.0
    %460 = vmatmul.mubr.f32.gmra.mrb[0].mxu0 %v296
    %v461 = vpop.f32.mrb[0].mxu0
    %v462 = vadd.f32 %v318, %v461
    %v463 = vpop.f32.mrb[0].mxu0
    %464 = vdwg.mxu0
    %v465 = vmax.f32 %v387, 0.0
    %v466 = vmax.f32 %v392, 0.0
    %v467 = vmax.f32 %v397, 0.0
    %v468 = vmax.f32 %v402, 0.0
    %v469 = vmax.f32 %v407, 0.0
    %v470 = vmax.f32 %v412, 0.0
    %v471 = vmax.f32 %v417, 0.0
    %v472 = vmax.f32 %v422, 0.0
    %v473 = vmax.f32 %v427, 0.0
    %v474 = vmax.f32 %v432, 0.0
    %v475 = vmax.f32 %v437, 0.0
    %v476 = vmax.f32 %v442, 0.0
    %v477 = vmax.f32 %v447, 0.0
    %v478 = vmax.f32 %v452, 0.0
    %v479 = vmax.f32 %v457, 0.0
    %v480 = vmax.f32 %v462, 0.0
    %481 = vst [vmem:[%s4] sm:$0xff] %v465
    %482 = vst [vmem:[%s4 + $0x8] sm:$0xff] %v466
    %483 = vst [vmem:[%s4 + $0x10] sm:$0xff] %v467
    %484 = vst [vmem:[%s4 + $0x18] sm:$0xff] %v468
    %485 = vst [vmem:[%s4 + $0x20] sm:$0xff] %v469
    %486 = vst [vmem:[%s4 + $0x28] sm:$0xff] %v470
    %487 = vst [vmem:[%s4 + $0x30] sm:$0xff] %v471
    %488 = vst [vmem:[%s4 + $0x38] sm:$0xff] %v472
    %489 = vst [vmem:[%s4 + $0x40] sm:$0xff] %v473
    %490 = vst [vmem:[%s4 + $0x48] sm:$0xff] %v474
    %491 = vst [vmem:[%s4 + $0x50] sm:$0xff] %v475
    %492 = vst [vmem:[%s4 + $0x58] sm:$0xff] %v476
    %493 = vst [vmem:[%s4 + $0x60] sm:$0xff] %v477
    %494 = vst [vmem:[%s4 + $0x68] sm:$0xff] %v478
    %495 = vst [vmem:[%s4 + $0x70] sm:$0xff] %v479
    %496 = vst [vmem:[%s4 + $0x78] sm:$0xff] %v480
  $region25: #{label_net.3} parent=0 // pred_fallthru
    _
  // Predicated region
  $region26: #{label_net.3} parent=0 // pred_check
    _
  $region27: #{label_net.3} parent=0 // pred_check_branch
    %498 = sbr.rel (0) target = $region29
  $region28: #{label_net.3} parent=0 // pred_region
    _
  $region29: #{label_net.3} parent=0 // pred_fallthru
    _
  // Predicated region
  $region30: #{label_net.3} parent=0 // pred_check
    _
  $region31: #{label_net.3} parent=0 // pred_check_branch
    %500 = sbr.rel (0) target = $region33
  $region32: #{label_net.3} parent=0 // pred_region
    _
  $region33: #{label_net.3} parent=0 // pred_fallthru
    _

</llo_original>
